<compile_context>
chip_gen: v6e
topology: v6e:2x2x1
jax: 0.10.0
libtpu: 0.0.40
codegen_flags: <defaults>
</compile_context>

<pallas_src>
import jax
import jax.numpy as jnp
import numpy as np
from jax.experimental import pallas as pl
from jax.experimental.pallas import tpu as pltpu

EPS = 1e-5  # PyTorch InstanceNorm1d default eps


# ---------------------------------------------------------------------------
# Host-side constant builders (skinny, O(NB*L))
# ---------------------------------------------------------------------------
def _reduce_const(nb, Lp, Lv, denom):
    """(nb*Lp, nb): per-(sample) segment reduce; weight 1/denom on the first
    Lv positions of each segment, 0 elsewhere."""
    r = np.zeros((nb * Lp, nb), np.float32)
    for n in range(nb):
        r[n * Lp:n * Lp + Lv, n] = 1.0 / denom
    return r


def _bcast_const(nb, Lp):
    """(nb, nb*Lp): broadcast a per-sample stat back over its segment."""
    b = np.zeros((nb, nb * Lp), np.float32)
    for n in range(nb):
        b[n, n * Lp:(n + 1) * Lp] = 1.0
    return b


# ---------------------------------------------------------------------------
# Fused kernel
# ---------------------------------------------------------------------------
def _make_dblock_kernel(cfgs, n_phases, Lp, NL, use_bf16_matmul):
    pow2 = (Lp & (Lp - 1)) == 0

    def kernel(*refs):
        out_ref = refs[-1]

        def _f32(v):
            return v if v.dtype == jnp.float32 else v.astype(jnp.float32)

        phases = [_f32(refs[i][...]) for i in range(n_phases)]
        t_seg = None       # lane position within a segment (built lazily once)
        h = None

        for li, cfg in enumerate(cfgs):
            srcs = phases if li == 0 else [h]

            # ---- InstanceNorm1d (affine=False, biased var, eps=1e-5) ------
            # Skinny reduce + skinny broadcast; pad / invalid lanes carry zero
            # weight in the reduce constant.
            if cfg["normalize"]:
                red = refs[cfg["red_idx"]][...]
                bc = refs[cfg["bc_idx"]][...]
                acc = srcs[0]
                for p in srcs[1:]:
                    acc = acc + p
                mean = jnp.dot(acc, red, preferred_element_type=jnp.float32)
                mean_b = jnp.dot(mean, bc, preferred_element_type=jnp.float32)
                ds = [p - mean_b for p in srcs]
                sq = ds[0] * ds[0]
                for d in ds[1:]:
                    sq = sq + d * d
                var = jnp.dot(sq, red, preferred_element_type=jnp.float32)
                if cfg["pad_count"]:
                    # each zero-padded tail position contributed mean^2
                    var = var - (cfg["pad_count"] / cfg["norm_len"]) * (mean * mean)
                scale_b = jnp.dot(jax.lax.rsqrt(var + EPS), bc,
                                  preferred_element_type=jnp.float32)
                srcs = [d * scale_b for d in ds]

            # ---- Conv1d: K shifted taps stacked on the contraction axis ---
            K, cin = cfg["K"], cfg["Cin"]
            taps = []
            if cfg["mode"] == "conv0":
                # Polyphase 'valid' conv with stride: tap k reads phase k%s
                # rolled by k//s.  Valid output positions never cross a
                # segment or touch padded lanes, so no masks are needed.
                s = cfg["stride"]
                for k in range(K):
                    hk = srcs[k % s]
                    q = k // s
                    if q:
                        hk = pltpu.roll(hk, (-q) % NL, axis=1)
                    taps.append(hk)
            else:
                # stride-1 'same' conv on the valid prefix (length Lv) of each
                # length-Lp segment; iota-derived masks implement the zero
                # padding and exclude cross-segment wrap / garbage pad lanes.
                hs = srcs[0]
                Lv = cfg["Lv_in"]
                for k in range(K):
                    off = k - cfg["pad_l"]
                    if off == 0:
                        taps.append(hs)
                        continue
                    if t_seg is None:
                        lane = jax.lax.broadcasted_iota(jnp.int32, (1, NL), 1)
                        t_seg = (lane & (Lp - 1)) if pow2 else (lane % Lp)
                    hk = pltpu.roll(hs, (-off) % NL, axis=1)
                    src = t_seg + off
                    keep = jnp.logical_and(src >= 0, src < Lv)
                    taps.append(jnp.where(keep, hk, 0.0))

            w = refs[cfg["w_idx"]][...]
            if use_bf16_matmul:
                taps = [t.astype(jnp.bfloat16) for t in taps]
            if K == 1:
                z = jnp.dot(w, taps[0], preferred_element_type=jnp.float32)
            elif cin % 8 == 0:
                # sublane-aligned: one deep MXU matmul over K*Cin
                H = jnp.concatenate(taps, axis=0)
                z = jnp.dot(w, H, preferred_element_type=jnp.float32)
            else:
                # unaligned sublane stack: accumulate K small dots instead
                z = jnp.dot(w[:, :cin], taps[0],
                            preferred_element_type=jnp.float32)
                for k in range(1, K):
                    z = z + jnp.dot(w[:, k * cin:(k + 1) * cin], taps[k],
                                    preferred_element_type=jnp.float32)

            z = z + refs[cfg["bias_idx"]][...]
            if cfg["relu"]:
                z = jnp.maximum(z, 0.0)
            h = z

        out_ref[...] = h.astype(out_ref.dtype)

    return kernel


# ---------------------------------------------------------------------------
# Wrapper
# ---------------------------------------------------------------------------
def _vmem_capacity_bytes():
    try:
        return int(pltpu.get_tpu_info().vmem_capacity_bytes)
    except Exception:
        return 64 << 20     # conservative: v7x per-TensorCore VMEM


def _pick_batch_tile(N, Lp, per_sample_bytes, budget):
    legal = [nb for nb in range(1, N + 1)
             if N % nb == 0 and (nb == N or (nb * Lp) % 128 == 0)]
    fitting = [nb for nb in legal if nb * per_sample_bytes <= budget] or [min(legal)]
    best = max(fitting)
    # Prefer >=2 grid steps (v7x dual TensorCores / pipelining) when the lane
    # width stays dense enough to amortize per-step overhead.
    multi = [nb for nb in fitting if N // nb >= 2 and nb * Lp >= 1024]
    return max(multi) if multi else best


def dblock_forward(x, params, *, stride, Nlc, normalize=True,
                   batch_tile=None, use_bf16_matmul=False):
    """x: (N, Cin, L) float32.  params from init_dblock_params."""
    N, Cin0, Lin0 = x.shape
    s = int(stride)
    w0, b0 = params["conv0"]
    K0 = int(w0.shape[2])
    assert K0 <= Lin0, "kernel_size must not exceed the input length"

    Lp = -(-Lin0 // s)                 # per-sample segment length in the kernel
    Lout0 = (Lin0 - K0) // s + 1       # conv0 'valid' output length (valid prefix)

    # ---- static layer list mirroring the PyTorch forward -------------------
    layer_list = [("conv0", w0, b0, normalize, True)]
    for j in range(Nlc - 1):
        wj, bj = params["lconv"][j]
        layer_list.append(("same", wj, bj, normalize, True))
    if Nlc > 0:
        wl, bl = params["lconv"][-1]
        layer_list.append(("same", wl, bl, False, False))

    # rough per-sample live-activation bytes (taps + stacked H + src + out)
    per_sample = 0
    for _, w, _, _, _ in layer_list:
        cout, cin, K = (int(d) for d in w.shape)
        per_sample = max(per_sample, ((2 * K + 4) * cin + cout) * Lp * 4)

    cap = _vmem_capacity_bytes()
    if batch_tile is None:
        nb = _pick_batch_tile(N, Lp, 2 * per_sample, int(0.5 * cap))
    else:
        nb = int(batch_tile)
        assert N % nb == 0, "batch_tile must divide N"
    if nb < N:
        assert (nb * Lp) % 128 == 0, (
            f"batch tile lane width nb*Lp={nb * Lp} must be a multiple of 128 "
            "(or use nb == N)")
    grid_steps = N // nb
    NL = nb * Lp
    single_buf = grid_steps > 1   # keep the trivial-grid path on the proven API

    # ---- host-side polyphase split of the input (layout plumbing only) -----
    pad_tail = s * Lp - Lin0
    xp = jnp.pad(x, ((0, 0), (0, 0), (0, pad_tail))) if pad_tail else x
    xr = xp.reshape(N, Cin0, Lp, s)
    phases = [jnp.transpose(xr[..., r], (1, 0, 2)).reshape(Cin0, N * Lp)
              for r in range(s)]

    # ---- assemble kernel inputs / specs / static per-layer configs ---------
    inputs, in_specs = [], []

    def _add(arr, spec):
        inputs.append(arr)
        in_specs.append(spec)
        return len(inputs) - 1

    def _const_spec(shape):
        idx = lambda i, _n=len(shape): (0,) * _n
        if single_buf and hasattr(pl, "Buffered"):
            try:   # constants are never re-fetched: single-buffer them
                return pl.BlockSpec(shape, idx, pipeline_mode=pl.Buffered(1))
            except TypeError:
                pass
        return pl.BlockSpec(shape, idx)

    for ph in phases:
        _add(ph, pl.BlockSpec((Cin0, NL), lambda i: (0, i)))

    const_cache = {}

    def _add_const(key, builder, shape):
        if key not in const_cache:
            const_cache[key] = _add(jnp.asarray(builder()), _const_spec(shape))
        return const_cache[key]

    mm_dtype = jnp.bfloat16 if use_bf16_matmul else jnp.float32
    cfgs = []
    Lv = Lin0
    for (mode, w, b, do_norm, do_relu) in layer_list:
        cout, cin, K = (int(d) for d in w.shape)
        # taps are stacked k-major / ci-minor along the contraction axis
        w_flat = jnp.transpose(w, (0, 2, 1)).reshape(cout, K * cin).astype(mm_dtype)
        cfg = dict(mode=mode, K=K, Cin=cin, Cout=cout,
                   normalize=do_norm, relu=do_relu,
                   w_idx=_add(w_flat, _const_spec((cout, K * cin))),
                   bias_idx=_add(jnp.asarray(b, jnp.float32).reshape(cout, 1),
                                 _const_spec((cout, 1))))
        if mode == "conv0":
            cfg["stride"] = s
            if do_norm:
                cfg["red_idx"] = _add_const(
                    ("red0", nb, Lp, Lin0),
                    lambda: _reduce_const(nb, Lp, Lp, Lin0), (nb * Lp, nb))
                cfg["bc_idx"] = _add_const(
                    ("bc", nb, Lp), lambda: _bcast_const(nb, Lp), (nb, nb * Lp))
                cfg["pad_count"] = pad_tail
                cfg["norm_len"] = float(Lin0)
            Lv_out = Lout0
        else:
            # TODO(synk): even kernel_size 'same' padding split not verified
            # against PyTorch (module demo uses odd K=3).
            cfg["pad_l"] = (K - 1) // 2
            cfg["Lv_in"] = Lv
            if do_norm:
                cfg["red_idx"] = _add_const(
                    ("red", nb, Lp, Lv),
                    lambda _lv=Lv: _reduce_const(nb, Lp, _lv, _lv), (nb * Lp, nb))
                cfg["bc_idx"] = _add_const(
                    ("bc", nb, Lp), lambda: _bcast_const(nb, Lp), (nb, nb * Lp))
                cfg["pad_count"] = 0
                cfg["norm_len"] = float(Lv)
            Lv_out = Lv
        cfgs.append(cfg)
        Lv = Lv_out

    cout_last = cfgs[-1]["Cout"]

    # ---- advisory cost estimate + explicit VMEM budget ----------------------
    flops = 0
    transcendentals = 0
    for cfg in cfgs:
        flops += 2 * cfg["Cout"] * cfg["K"] * cfg["Cin"] * N * Lp
        if cfg["normalize"]:
            flops += 8 * cfg["Cin"] * N * Lp * nb + 8 * cfg["Cin"] * N * Lp
            transcendentals += cfg["Cin"] * N
    bytes_accessed = int(
        sum(int(np.prod(a.shape)) * a.dtype.itemsize for a in inputs)
        + N * Lp * cout_last * x.dtype.itemsize)

    const_bytes = sum(int(np.prod(a.shape)) * a.dtype.itemsize
                      for a in inputs[len(phases):])
    est = (2 * len(phases) * Cin0 * NL * 4            # double-buffered inputs
           + 2 * cout_last * NL * 4                   # double-buffered output
           + (1 if single_buf else 2) * const_bytes
           + 2 * per_sample * nb)                     # live activation slabs
    vmem_limit = int(min(int(0.9 * cap), max(32 << 20, 4 * est)))

    out2d = pl.pallas_call(
        _make_dblock_kernel(cfgs, len(phases), Lp, NL, use_bf16_matmul),
        out_shape=jax.ShapeDtypeStruct((cout_last, N * Lp), x.dtype),
        grid_spec=pltpu.PrefetchScalarGridSpec(
            num_scalar_prefetch=0,
            grid=(grid_steps,),
            in_specs=in_specs,
            out_specs=pl.BlockSpec((cout_last, NL), lambda i: (0, i)),
        ),
        compiler_params=pltpu.CompilerParams(
            dimension_semantics=("parallel",),
            vmem_limit_bytes=vmem_limit),
        cost_estimate=pl.CostEstimate(flops=int(flops),
                                      transcendentals=int(transcendentals),
                                      bytes_accessed=bytes_accessed),
    )(*inputs)

    # (Cout, N*Lp) -> (N, Cout, Lp) -> crop the valid prefix of each segment
    out = jnp.transpose(out2d.reshape(cout_last, N, Lp), (1, 0, 2))
    return out[..., :Lv]


# ---------------------------------------------------------------------------
# Parameters (PyTorch Conv1d default init) + pure-JAX reference
# ---------------------------------------------------------------------------
def init_dblock_params(key, Nc_io, kernel_size, Nlc):
    Nc_io = list(Nc_io)
    while len(Nc_io) <= Nlc + 1:
        Nc_io.append(Nc_io[-1])

    def conv_init(k, cin, cout, K):
        kw, kb = jax.random.split(k)
        bound = 1.0 / np.sqrt(cin * K)
        w = jax.random.uniform(kw, (cout, cin, K), jnp.float32, -bound, bound)
        b = jax.random.uniform(kb, (cout,), jnp.float32, -bound, bound)
        return w, b

    key, k0 = jax.random.split(key)
    params = {"conv0": conv_init(k0, Nc_io[0], Nc_io[1], kernel_size),
              "lconv": []}
    for j in range(Nlc):
        key, kj = jax.random.split(key)
        params["lconv"].append(conv_init(kj, Nc_io[j + 1], Nc_io[j + 2],
                                         kernel_size))
    return params


def _ref_dblock(x, params, *, stride, Nlc, normalize=True):
    def inorm(v):
        m = v.mean(axis=2, keepdims=True)
        var = ((v - m) ** 2).mean(axis=2, keepdims=True)
        return (v - m) / jnp.sqrt(var + EPS)

    def conv(v, w, b, s, pad):
        y = jax.lax.conv_general_dilated(
            v, w, (s,), pad, dimension_numbers=("NCH", "OIH", "NCH"))
        return y + b[None, :, None]

    w0, b0 = params["conv0"]
    if normalize:
        x = inorm(x)
    x = jax.nn.relu(conv(x, w0, b0, stride, "VALID"))
    for j in range(Nlc - 1):
        wj, bj = params["lconv"][j]
        if normalize:
            x = inorm(x)
        x = jax.nn.relu(conv(x, wj, bj, 1, "SAME"))
    if Nlc > 0:
        wl, bl = params["lconv"][-1]
        x = conv(x, wl, bl, 1, "SAME")
    return x


if __name__ == "__main__":
    # DBlock(Nc_io=[4, 8, 8, 8], kernel_size=3, stride=2, Nlc=2, normalize=True)
    Nc_io = [4, 8, 8, 8]
    kernel_size = 3
    stride = 2
    Nlc = 2
    normalize = True

    key = jax.random.PRNGKey(0)
    kx, kp = jax.random.split(key)
    x = jax.random.normal(kx, (2, 4, 16), dtype=jnp.float32)   # (N, C, L)
    params = init_dblock_params(kp, Nc_io, kernel_size, Nlc)

    out = dblock_forward(x, params, stride=stride, Nlc=Nlc, normalize=normalize)
    out = jax.block_until_ready(out)

    ref = _ref_dblock(x, params, stride=stride, Nlc=Nlc, normalize=normalize)
    assert out.shape == ref.shape == (2, 8, 7), out.shape
    np.testing.assert_allclose(np.asarray(out), np.asarray(ref),
                               rtol=1e-4, atol=5e-4)
    print("KERNEL_OK")
</pallas_src>

<mosaic_0001>
module attributes {stable_mosaic.version = 11 : i64} {
  func.func @kernel(%arg0: i32, %arg1: memref<4x16xf32, #tpu.memory_space<vmem>>, %arg2: memref<4x16xf32, #tpu.memory_space<vmem>>, %arg3: memref<8x12xf32, #tpu.memory_space<vmem>>, %arg4: memref<8x1xf32, #tpu.memory_space<vmem>>, %arg5: memref<16x2xf32, #tpu.memory_space<vmem>>, %arg6: memref<2x16xf32, #tpu.memory_space<vmem>>, %arg7: memref<8x24xf32, #tpu.memory_space<vmem>>, %arg8: memref<8x1xf32, #tpu.memory_space<vmem>>, %arg9: memref<16x2xf32, #tpu.memory_space<vmem>>, %arg10: memref<8x24xf32, #tpu.memory_space<vmem>>, %arg11: memref<8x1xf32, #tpu.memory_space<vmem>>, %arg12: memref<8x16xf32, #tpu.memory_space<vmem>>) attributes {dimension_semantics = [#tpu.dimension_semantics<parallel>], iteration_bounds = array<i64: 1>, scalar_prefetch = 0 : i64, scratch_operands = 0 : i64, tpu.core_type = #tpu.core_type<tc>, window_params = [{transform_indices = @transform_0, window_bounds = array<i64: 4, 16>}, {transform_indices = @transform_1, window_bounds = array<i64: 4, 16>}, {pipeline_mode = #tpu.pipeline_mode<synchronous>, transform_indices = @transform_2, window_bounds = array<i64: 8, 12>}, {pipeline_mode = #tpu.pipeline_mode<synchronous>, transform_indices = @transform_3, window_bounds = array<i64: 8, 1>}, {pipeline_mode = #tpu.pipeline_mode<synchronous>, transform_indices = @transform_4, window_bounds = array<i64: 16, 2>}, {pipeline_mode = #tpu.pipeline_mode<synchronous>, transform_indices = @transform_5, window_bounds = array<i64: 2, 16>}, {pipeline_mode = #tpu.pipeline_mode<synchronous>, transform_indices = @transform_6, window_bounds = array<i64: 8, 24>}, {pipeline_mode = #tpu.pipeline_mode<synchronous>, transform_indices = @transform_7, window_bounds = array<i64: 8, 1>}, {pipeline_mode = #tpu.pipeline_mode<synchronous>, transform_indices = @transform_8, window_bounds = array<i64: 16, 2>}, {pipeline_mode = #tpu.pipeline_mode<synchronous>, transform_indices = @transform_9, window_bounds = array<i64: 8, 24>}, {pipeline_mode = #tpu.pipeline_mode<synchronous>, transform_indices = @transform_10, window_bounds = array<i64: 8, 1>}, {transform_indices = @transform_11, window_bounds = array<i64: 8, 16>}]} {
    %c0 = arith.constant 0 : index
    %c0_0 = arith.constant 0 : index
    %0 = vector.load %arg1[%c0, %c0_0] : memref<4x16xf32, #tpu.memory_space<vmem>>, vector<4x16xf32>
    %c0_1 = arith.constant 0 : index
    %c0_2 = arith.constant 0 : index
    %1 = vector.load %arg2[%c0_1, %c0_2] : memref<4x16xf32, #tpu.memory_space<vmem>>, vector<4x16xf32>
    %c0_3 = arith.constant 0 : index
    %c0_4 = arith.constant 0 : index
    %2 = vector.load %arg5[%c0_3, %c0_4] : memref<16x2xf32, #tpu.memory_space<vmem>>, vector<16x2xf32>
    %c0_5 = arith.constant 0 : index
    %c0_6 = arith.constant 0 : index
    %3 = vector.load %arg6[%c0_5, %c0_6] : memref<2x16xf32, #tpu.memory_space<vmem>>, vector<2x16xf32>
    %4 = arith.addf %0, %1 : vector<4x16xf32>
    %cst = arith.constant dense<0.000000e+00> : vector<4x2xf32>
    %5 = tpu.matmul %4, %2, %cst {dimension_numbers = #tpu.dot_dimension_numbers<[1], [0], [0], [1], [0, 0, 1, 1], [], []>} : vector<4x16xf32>, vector<16x2xf32>, vector<4x2xf32> -> vector<4x2xf32>
    %cst_7 = arith.constant dense<0.000000e+00> : vector<4x16xf32>
    %6 = tpu.matmul %5, %3, %cst_7 {dimension_numbers = #tpu.dot_dimension_numbers<[1], [0], [0], [1], [0, 0, 1, 1], [], []>} : vector<4x2xf32>, vector<2x16xf32>, vector<4x16xf32> -> vector<4x16xf32>
    %7 = arith.subf %0, %6 : vector<4x16xf32>
    %8 = arith.subf %1, %6 : vector<4x16xf32>
    %9 = arith.mulf %7, %7 : vector<4x16xf32>
    %10 = arith.mulf %8, %8 : vector<4x16xf32>
    %11 = arith.addf %9, %10 : vector<4x16xf32>
    %cst_8 = arith.constant dense<0.000000e+00> : vector<4x2xf32>
    %12 = tpu.matmul %11, %2, %cst_8 {dimension_numbers = #tpu.dot_dimension_numbers<[1], [0], [0], [1], [0, 0, 1, 1], [], []>} : vector<4x16xf32>, vector<16x2xf32>, vector<4x2xf32> -> vector<4x2xf32>
    %cst_9 = arith.constant 9.99999974E-6 : f32
    %13 = vector.broadcast %cst_9 : f32 to vector<4x2xf32>
    %14 = arith.addf %12, %13 : vector<4x2xf32>
    %15 = math.rsqrt %14 : vector<4x2xf32>
    %cst_10 = arith.constant dense<0.000000e+00> : vector<4x16xf32>
    %16 = tpu.matmul %15, %3, %cst_10 {dimension_numbers = #tpu.dot_dimension_numbers<[1], [0], [0], [1], [0, 0, 1, 1], [], []>} : vector<4x2xf32>, vector<2x16xf32>, vector<4x16xf32> -> vector<4x16xf32>
    %17 = arith.mulf %7, %16 : vector<4x16xf32>
    %18 = arith.mulf %8, %16 : vector<4x16xf32>
    %c15_i32 = arith.constant 15 : i32
    %19 = tpu.dynamic_rotate %17 by %c15_i32 dim 1 : vector<4x16xf32>, i32 -> vector<4x16xf32>
    %c0_11 = arith.constant 0 : index
    %c0_12 = arith.constant 0 : index
    %20 = vector.load %arg3[%c0_11, %c0_12] : memref<8x12xf32, #tpu.memory_space<vmem>>, vector<8x12xf32>
    %21 = vector.extract_strided_slice %20 {offsets = [0, 0], sizes = [8, 4], strides = [1, 1]} : vector<8x12xf32> to vector<8x4xf32>
    %cst_13 = arith.constant dense<0.000000e+00> : vector<8x16xf32>
    %22 = tpu.matmul %21, %17, %cst_13 {dimension_numbers = #tpu.dot_dimension_numbers<[1], [0], [0], [1], [0, 0, 1, 1], [], []>} : vector<8x4xf32>, vector<4x16xf32>, vector<8x16xf32> -> vector<8x16xf32>
    %23 = vector.extract_strided_slice %20 {offsets = [0, 4], sizes = [8, 4], strides = [1, 1]} : vector<8x12xf32> to vector<8x4xf32>
    %cst_14 = arith.constant dense<0.000000e+00> : vector<8x16xf32>
    %24 = tpu.matmul %23, %18, %cst_14 {dimension_numbers = #tpu.dot_dimension_numbers<[1], [0], [0], [1], [0, 0, 1, 1], [], []>} : vector<8x4xf32>, vector<4x16xf32>, vector<8x16xf32> -> vector<8x16xf32>
    %25 = arith.addf %22, %24 : vector<8x16xf32>
    %26 = vector.extract_strided_slice %20 {offsets = [0, 8], sizes = [8, 4], strides = [1, 1]} : vector<8x12xf32> to vector<8x4xf32>
    %cst_15 = arith.constant dense<0.000000e+00> : vector<8x16xf32>
    %27 = tpu.matmul %26, %19, %cst_15 {dimension_numbers = #tpu.dot_dimension_numbers<[1], [0], [0], [1], [0, 0, 1, 1], [], []>} : vector<8x4xf32>, vector<4x16xf32>, vector<8x16xf32> -> vector<8x16xf32>
    %28 = arith.addf %25, %27 : vector<8x16xf32>
    %c0_16 = arith.constant 0 : index
    %c0_17 = arith.constant 0 : index
    %29 = vector.load %arg4[%c0_16, %c0_17] : memref<8x1xf32, #tpu.memory_space<vmem>>, vector<8x1xf32>
    %30 = vector.broadcast %29 : vector<8x1xf32> to vector<8x16xf32>
    %31 = arith.addf %28, %30 : vector<8x16xf32>
    %cst_18 = arith.constant 0.000000e+00 : f32
    %32 = vector.broadcast %cst_18 : f32 to vector<8x16xf32>
    %33 = arith.maximumf %31, %32 : vector<8x16xf32>
    %c0_19 = arith.constant 0 : index
    %c0_20 = arith.constant 0 : index
    %34 = vector.load %arg9[%c0_19, %c0_20] : memref<16x2xf32, #tpu.memory_space<vmem>>, vector<16x2xf32>
    %c0_21 = arith.constant 0 : index
    %c0_22 = arith.constant 0 : index
    %35 = vector.load %arg6[%c0_21, %c0_22] : memref<2x16xf32, #tpu.memory_space<vmem>>, vector<2x16xf32>
    %cst_23 = arith.constant dense<0.000000e+00> : vector<8x2xf32>
    %36 = tpu.matmul %33, %34, %cst_23 {dimension_numbers = #tpu.dot_dimension_numbers<[1], [0], [0], [1], [0, 0, 1, 1], [], []>} : vector<8x16xf32>, vector<16x2xf32>, vector<8x2xf32> -> vector<8x2xf32>
    %cst_24 = arith.constant dense<0.000000e+00> : vector<8x16xf32>
    %37 = tpu.matmul %36, %35, %cst_24 {dimension_numbers = #tpu.dot_dimension_numbers<[1], [0], [0], [1], [0, 0, 1, 1], [], []>} : vector<8x2xf32>, vector<2x16xf32>, vector<8x16xf32> -> vector<8x16xf32>
    %38 = arith.subf %33, %37 : vector<8x16xf32>
    %39 = arith.mulf %38, %38 : vector<8x16xf32>
    %cst_25 = arith.constant dense<0.000000e+00> : vector<8x2xf32>
    %40 = tpu.matmul %39, %34, %cst_25 {dimension_numbers = #tpu.dot_dimension_numbers<[1], [0], [0], [1], [0, 0, 1, 1], [], []>} : vector<8x16xf32>, vector<16x2xf32>, vector<8x2xf32> -> vector<8x2xf32>
    %cst_26 = arith.constant 9.99999974E-6 : f32
    %41 = vector.broadcast %cst_26 : f32 to vector<8x2xf32>
    %42 = arith.addf %40, %41 : vector<8x2xf32>
    %43 = math.rsqrt %42 : vector<8x2xf32>
    %cst_27 = arith.constant dense<0.000000e+00> : vector<8x16xf32>
    %44 = tpu.matmul %43, %35, %cst_27 {dimension_numbers = #tpu.dot_dimension_numbers<[1], [0], [0], [1], [0, 0, 1, 1], [], []>} : vector<8x2xf32>, vector<2x16xf32>, vector<8x16xf32> -> vector<8x16xf32>
    %45 = arith.mulf %38, %44 : vector<8x16xf32>
    %46 = tpu.iota {dimensions = array<i32: 1>} : vector<1x16xi32>
    %c7_i32 = arith.constant 7 : i32
    %47 = vector.broadcast %c7_i32 : i32 to vector<1x16xi32>
    %48 = arith.andi %46, %47 : vector<1x16xi32>
    %c1_i32 = arith.constant 1 : i32
    %49 = tpu.dynamic_rotate %45 by %c1_i32 dim 1 : vector<8x16xf32>, i32 -> vector<8x16xf32>
    %c-1_i32 = arith.constant -1 : i32
    %50 = vector.broadcast %c-1_i32 : i32 to vector<1x16xi32>
    %51 = arith.addi %48, %50 : vector<1x16xi32>
    %c0_i32 = arith.constant 0 : i32
    %52 = vector.broadcast %c0_i32 : i32 to vector<1x16xi32>
    %53 = arith.cmpi sge, %51, %52 : vector<1x16xi32>
    %c7_i32_28 = arith.constant 7 : i32
    %54 = vector.broadcast %c7_i32_28 : i32 to vector<1x16xi32>
    %55 = arith.cmpi slt, %51, %54 : vector<1x16xi32>
    %56 = arith.andi %53, %55 : vector<1x16xi1>
    %cst_29 = arith.constant 0.000000e+00 : f32
    %57 = vector.shape_cast %56 : vector<1x16xi1> to vector<1x16xi1>
    %58 = vector.broadcast %57 : vector<1x16xi1> to vector<8x16xi1>
    %59 = vector.broadcast %cst_29 : f32 to vector<8x16xf32>
    %60 = arith.select %58, %49, %59 : vector<8x16xi1>, vector<8x16xf32>
    %c15_i32_30 = arith.constant 15 : i32
    %61 = tpu.dynamic_rotate %45 by %c15_i32_30 dim 1 : vector<8x16xf32>, i32 -> vector<8x16xf32>
    %c1_i32_31 = arith.constant 1 : i32
    %62 = vector.broadcast %c1_i32_31 : i32 to vector<1x16xi32>
    %63 = arith.addi %48, %62 : vector<1x16xi32>
    %c0_i32_32 = arith.constant 0 : i32
    %64 = vector.broadcast %c0_i32_32 : i32 to vector<1x16xi32>
    %65 = arith.cmpi sge, %63, %64 : vector<1x16xi32>
    %c7_i32_33 = arith.constant 7 : i32
    %66 = vector.broadcast %c7_i32_33 : i32 to vector<1x16xi32>
    %67 = arith.cmpi slt, %63, %66 : vector<1x16xi32>
    %68 = arith.andi %65, %67 : vector<1x16xi1>
    %cst_34 = arith.constant 0.000000e+00 : f32
    %69 = vector.shape_cast %68 : vector<1x16xi1> to vector<1x16xi1>
    %70 = vector.broadcast %69 : vector<1x16xi1> to vector<8x16xi1>
    %71 = vector.broadcast %cst_34 : f32 to vector<8x16xf32>
    %72 = arith.select %70, %61, %71 : vector<8x16xi1>, vector<8x16xf32>
    %c0_35 = arith.constant 0 : index
    %c0_36 = arith.constant 0 : index
    %73 = vector.load %arg7[%c0_35, %c0_36] : memref<8x24xf32, #tpu.memory_space<vmem>>, vector<8x24xf32>
    %74 = tpu.concatenate %60, %45, %72 in 0 : vector<8x16xf32>, vector<8x16xf32>, vector<8x16xf32> -> vector<24x16xf32>
    %cst_37 = arith.constant dense<0.000000e+00> : vector<8x16xf32>
    %75 = tpu.matmul %73, %74, %cst_37 {dimension_numbers = #tpu.dot_dimension_numbers<[1], [0], [0], [1], [0, 0, 1, 1], [], []>} : vector<8x24xf32>, vector<24x16xf32>, vector<8x16xf32> -> vector<8x16xf32>
    %c0_38 = arith.constant 0 : index
    %c0_39 = arith.constant 0 : index
    %76 = vector.load %arg8[%c0_38, %c0_39] : memref<8x1xf32, #tpu.memory_space<vmem>>, vector<8x1xf32>
    %77 = vector.broadcast %76 : vector<8x1xf32> to vector<8x16xf32>
    %78 = arith.addf %75, %77 : vector<8x16xf32>
    %cst_40 = arith.constant 0.000000e+00 : f32
    %79 = vector.broadcast %cst_40 : f32 to vector<8x16xf32>
    %80 = arith.maximumf %78, %79 : vector<8x16xf32>
    %c1_i32_41 = arith.constant 1 : i32
    %81 = tpu.dynamic_rotate %80 by %c1_i32_41 dim 1 : vector<8x16xf32>, i32 -> vector<8x16xf32>
    %c-1_i32_42 = arith.constant -1 : i32
    %82 = vector.broadcast %c-1_i32_42 : i32 to vector<1x16xi32>
    %83 = arith.addi %48, %82 : vector<1x16xi32>
    %c0_i32_43 = arith.constant 0 : i32
    %84 = vector.broadcast %c0_i32_43 : i32 to vector<1x16xi32>
    %85 = arith.cmpi sge, %83, %84 : vector<1x16xi32>
    %c7_i32_44 = arith.constant 7 : i32
    %86 = vector.broadcast %c7_i32_44 : i32 to vector<1x16xi32>
    %87 = arith.cmpi slt, %83, %86 : vector<1x16xi32>
    %88 = arith.andi %85, %87 : vector<1x16xi1>
    %cst_45 = arith.constant 0.000000e+00 : f32
    %89 = vector.shape_cast %88 : vector<1x16xi1> to vector<1x16xi1>
    %90 = vector.broadcast %89 : vector<1x16xi1> to vector<8x16xi1>
    %91 = vector.broadcast %cst_45 : f32 to vector<8x16xf32>
    %92 = arith.select %90, %81, %91 : vector<8x16xi1>, vector<8x16xf32>
    %c15_i32_46 = arith.constant 15 : i32
    %93 = tpu.dynamic_rotate %80 by %c15_i32_46 dim 1 : vector<8x16xf32>, i32 -> vector<8x16xf32>
    %c1_i32_47 = arith.constant 1 : i32
    %94 = vector.broadcast %c1_i32_47 : i32 to vector<1x16xi32>
    %95 = arith.addi %48, %94 : vector<1x16xi32>
    %c0_i32_48 = arith.constant 0 : i32
    %96 = vector.broadcast %c0_i32_48 : i32 to vector<1x16xi32>
    %97 = arith.cmpi sge, %95, %96 : vector<1x16xi32>
    %c7_i32_49 = arith.constant 7 : i32
    %98 = vector.broadcast %c7_i32_49 : i32 to vector<1x16xi32>
    %99 = arith.cmpi slt, %95, %98 : vector<1x16xi32>
    %100 = arith.andi %97, %99 : vector<1x16xi1>
    %cst_50 = arith.constant 0.000000e+00 : f32
    %101 = vector.shape_cast %100 : vector<1x16xi1> to vector<1x16xi1>
    %102 = vector.broadcast %101 : vector<1x16xi1> to vector<8x16xi1>
    %103 = vector.broadcast %cst_50 : f32 to vector<8x16xf32>
    %104 = arith.select %102, %93, %103 : vector<8x16xi1>, vector<8x16xf32>
    %c0_51 = arith.constant 0 : index
    %c0_52 = arith.constant 0 : index
    %105 = vector.load %arg10[%c0_51, %c0_52] : memref<8x24xf32, #tpu.memory_space<vmem>>, vector<8x24xf32>
    %106 = tpu.concatenate %92, %80, %104 in 0 : vector<8x16xf32>, vector<8x16xf32>, vector<8x16xf32> -> vector<24x16xf32>
    %cst_53 = arith.constant dense<0.000000e+00> : vector<8x16xf32>
    %107 = tpu.matmul %105, %106, %cst_53 {dimension_numbers = #tpu.dot_dimension_numbers<[1], [0], [0], [1], [0, 0, 1, 1], [], []>} : vector<8x24xf32>, vector<24x16xf32>, vector<8x16xf32> -> vector<8x16xf32>
    %c0_54 = arith.constant 0 : index
    %c0_55 = arith.constant 0 : index
    %108 = vector.load %arg11[%c0_54, %c0_55] : memref<8x1xf32, #tpu.memory_space<vmem>>, vector<8x1xf32>
    %109 = vector.broadcast %108 : vector<8x1xf32> to vector<8x16xf32>
    %110 = arith.addf %107, %109 : vector<8x16xf32>
    %c0_56 = arith.constant 0 : index
    %c0_57 = arith.constant 0 : index
    %111 = vector.load %arg12[%c0_56, %c0_57] : memref<8x16xf32, #tpu.memory_space<vmem>>, vector<8x16xf32>
    tpu.vector_store %arg12[%c0_56, %c0_57], %110 {strides = array<i32>} : memref<8x16xf32, #tpu.memory_space<vmem>>, vector<8x16xf32>,
    return
  }
  func.func @transform_0(%arg0: i32) -> (i32, i32) {
    %c0_i32 = arith.constant 0 : i32
    %c0_i32_0 = arith.constant 0 : i32
    return %c0_i32, %arg0 : i32, i32
  }
  func.func @transform_1(%arg0: i32) -> (i32, i32) {
    %c0_i32 = arith.constant 0 : i32
    %c0_i32_0 = arith.constant 0 : i32
    return %c0_i32, %arg0 : i32, i32
  }
  func.func @transform_2(%arg0: i32) -> (i32, i32) {
    %c0_i32 = arith.constant 0 : i32
    %c0_i32_0 = arith.constant 0 : i32
    %c0_i32_1 = arith.constant 0 : i32
    return %c0_i32, %c0_i32_0 : i32, i32
  }
  func.func @transform_3(%arg0: i32) -> (i32, i32) {
    %c0_i32 = arith.constant 0 : i32
    %c0_i32_0 = arith.constant 0 : i32
    %c0_i32_1 = arith.constant 0 : i32
    return %c0_i32, %c0_i32_0 : i32, i32
  }
  func.func @transform_4(%arg0: i32) -> (i32, i32) {
    %c0_i32 = arith.constant 0 : i32
    %c0_i32_0 = arith.constant 0 : i32
    %c0_i32_1 = arith.constant 0 : i32
    return %c0_i32, %c0_i32_0 : i32, i32
  }
  func.func @transform_5(%arg0: i32) -> (i32, i32) {
    %c0_i32 = arith.constant 0 : i32
    %c0_i32_0 = arith.constant 0 : i32
    %c0_i32_1 = arith.constant 0 : i32
    return %c0_i32, %c0_i32_0 : i32, i32
  }
  func.func @transform_6(%arg0: i32) -> (i32, i32) {
    %c0_i32 = arith.constant 0 : i32
    %c0_i32_0 = arith.constant 0 : i32
    %c0_i32_1 = arith.constant 0 : i32
    return %c0_i32, %c0_i32_0 : i32, i32
  }
  func.func @transform_7(%arg0: i32) -> (i32, i32) {
    %c0_i32 = arith.constant 0 : i32
    %c0_i32_0 = arith.constant 0 : i32
    %c0_i32_1 = arith.constant 0 : i32
    return %c0_i32, %c0_i32_0 : i32, i32
  }
  func.func @transform_8(%arg0: i32) -> (i32, i32) {
    %c0_i32 = arith.constant 0 : i32
    %c0_i32_0 = arith.constant 0 : i32
    %c0_i32_1 = arith.constant 0 : i32
    return %c0_i32, %c0_i32_0 : i32, i32
  }
  func.func @transform_9(%arg0: i32) -> (i32, i32) {
    %c0_i32 = arith.constant 0 : i32
    %c0_i32_0 = arith.constant 0 : i32
    %c0_i32_1 = arith.constant 0 : i32
    return %c0_i32, %c0_i32_0 : i32, i32
  }
  func.func @transform_10(%arg0: i32) -> (i32, i32) {
    %c0_i32 = arith.constant 0 : i32
    %c0_i32_0 = arith.constant 0 : i32
    %c0_i32_1 = arith.constant 0 : i32
    return %c0_i32, %c0_i32_0 : i32, i32
  }
  func.func @transform_11(%arg0: i32) -> (i32, i32) {
    %c0_i32 = arith.constant 0 : i32
    %c0_i32_0 = arith.constant 0 : i32
    return %c0_i32, %arg0 : i32, i32
  }
}

</mosaic_0001>

<llo_original>
// kernel: tpu_custom_call.1
$region0: #{tpu_custom_call.1}
  #allocation0 [shape = 'u32[]', space=smem, size = 0x4, offset = 0x4, fixed_abs, tag = 'smem constant byte address 0x4 - core index']
  #allocation1 [shape = 'u32[144,128]{1,0:T(1,128)}', space=vmem, size = 0x12000, scoped, tag = 'internal scratch']
  %s0 = inlined_call_operand.vmem [shape: f32[4,16], index: 0, kind: input, shape index: {}]
  %s1 = inlined_call_operand.vmem [shape: f32[4,16], index: 1, kind: input, shape index: {}]
  %s2 = inlined_call_operand.vmem [shape: f32[8,12], index: 2, kind: input, shape index: {}]
  %s3 = inlined_call_operand.vmem [shape: f32[8,1], index: 3, kind: input, shape index: {}]
  %s4 = inlined_call_operand.vmem [shape: f32[16,2], index: 4, kind: input, shape index: {}]
  %s5 = inlined_call_operand.vmem [shape: f32[2,16], index: 5, kind: input, shape index: {}]
  %s6 = inlined_call_operand.vmem [shape: f32[8,24], index: 6, kind: input, shape index: {}]
  %s7 = inlined_call_operand.vmem [shape: f32[8,1], index: 7, kind: input, shape index: {}]
  %s8 = inlined_call_operand.vmem [shape: f32[16,2], index: 8, kind: input, shape index: {}]
  %s9 = inlined_call_operand.vmem [shape: f32[8,24], index: 9, kind: input, shape index: {}]
  %s10 = inlined_call_operand.vmem [shape: f32[8,1], index: 10, kind: input, shape index: {}]
  %s11 = inlined_call_operand.hbm [shape: f32[8,16], index: 11, kind: output, shape index: {}]
  %s12 = sld [smem:[#allocation0]]
  $region54: #{tpu_custom_call.1} parent=0
    _
  %s14 = ssub.s32 1, %s12
  %s15 = scalar_select 0, %s14, %s12
  $region1: #{tpu_custom_call.1} parent=0
    #allocation2 [shape = 'u8[4096]{0}', space=vmem, size = 0x1000, scoped, tag = 'output window, operand 0, single buffered']
    #allocation3 [shape = 's32[1]{0}', space=sflag, size = 0x4, scoped, tag = 'scoped memory for tpu_custom_call.1']
    %16 = vsyncpa [#allocation3], 0
    // Predicated region
    $region2: #{tpu_custom_call.1} parent=1 // pred_check
      _
    $region3: #{tpu_custom_call.1} parent=1 // pred_check_branch
      %18 = sbr.rel (0) target = $region5
    $region4: #{tpu_custom_call.1} parent=1 // pred_region
      _
    $region5: #{tpu_custom_call.1} parent=1 // pred_fallthru
      _
    // Predicated region
    $region6: #{tpu_custom_call.1} parent=1 // pred_check
      _
    $region7: #{tpu_custom_call.1} parent=1 // pred_check_branch
      %20 = sbr.rel (0) target = $region9
    $region8: #{tpu_custom_call.1} parent=1 // pred_region
      _
    $region9: #{tpu_custom_call.1} parent=1 // pred_fallthru
      _
    // Predicated region
    $region10: #{tpu_custom_call.1} parent=1 // pred_check
      _
    $region11: #{tpu_custom_call.1} parent=1 // pred_check_branch
      %22 = sbr.rel (0) target = $region13
    $region12: #{tpu_custom_call.1} parent=1 // pred_region
      _
    $region13: #{tpu_custom_call.1} parent=1 // pred_fallthru
      _
    // Predicated region
    $region14: #{tpu_custom_call.1} parent=1 // pred_check
      _
    $region15: #{tpu_custom_call.1} parent=1 // pred_check_branch
      %24 = sbr.rel (0) target = $region17
    $region16: #{tpu_custom_call.1} parent=1 // pred_region
      _
    $region17: #{tpu_custom_call.1} parent=1 // pred_fallthru
      _
    // Predicated region
    $region18: #{tpu_custom_call.1} parent=1 // pred_check
      _
    $region19: #{tpu_custom_call.1} parent=1 // pred_check_branch
      %26 = sbr.rel (0) target = $region21
    $region20: #{tpu_custom_call.1} parent=1 // pred_region
      _
    $region21: #{tpu_custom_call.1} parent=1 // pred_fallthru
      _
    // Predicated region
    $region22: #{tpu_custom_call.1} parent=1 // pred_check
      _
    $region23: #{tpu_custom_call.1} parent=1 // pred_check_branch
      %28 = sbr.rel (0) target = $region25
    $region24: #{tpu_custom_call.1} parent=1 // pred_region
      _
    $region25: #{tpu_custom_call.1} parent=1 // pred_fallthru
      _
    // Predicated region
    $region26: #{tpu_custom_call.1} parent=1 // pred_check
      _
    $region27: #{tpu_custom_call.1} parent=1 // pred_check_branch
      %30 = sbr.rel (0) target = $region29
    $region28: #{tpu_custom_call.1} parent=1 // pred_region
      _
    $region29: #{tpu_custom_call.1} parent=1 // pred_fallthru
      _
    // Predicated region
    $region30: #{tpu_custom_call.1} parent=1 // pred_check
      _
    $region31: #{tpu_custom_call.1} parent=1 // pred_check_branch
      %32 = sbr.rel (0) target = $region33
    $region32: #{tpu_custom_call.1} parent=1 // pred_region
      _
    $region33: #{tpu_custom_call.1} parent=1 // pred_fallthru
      _
    // Predicated region
    $region34: #{tpu_custom_call.1} parent=1 // pred_check
      _
    $region35: #{tpu_custom_call.1} parent=1 // pred_check_branch
      %34 = sbr.rel (0) target = $region37
    $region36: #{tpu_custom_call.1} parent=1 // pred_region
      _
    $region37: #{tpu_custom_call.1} parent=1 // pred_fallthru
      _
    // Predicated region
    $region38: #{tpu_custom_call.1} parent=1 // pred_check
      _
    $region39: #{tpu_custom_call.1} parent=1 // pred_check_branch
      %36 = sbr.rel (0) target = $region41
    $region40: #{tpu_custom_call.1} parent=1 // pred_region
      _
    $region41: #{tpu_custom_call.1} parent=1 // pred_fallthru
      _
    // Predicated region
    $region42: #{tpu_custom_call.1} parent=1 // pred_check
      _
    $region43: #{tpu_custom_call.1} parent=1 // pred_check_branch
      %38 = sbr.rel (0) target = $region45
    $region44: #{tpu_custom_call.1} parent=1 // pred_region
      _
    $region45: #{tpu_custom_call.1} parent=1 // pred_fallthru
      _
    %v39 = vld [vmem:[%s0] sm:$0xf]
    %v40 = vld [vmem:[%s1] sm:$0xf]
    %v41 = vld [vmem:[%s4] sm:$0xff]
    %v42 = vld [vmem:[%s4 + $0x8] sm:$0xff]
    %v43 = vld [vmem:[%s5] sm:$0x3]
    %v44 = vadd.f32 %v39, %v40
    %vm45 = vcmask 130048
    %v47 = vsel %vm45, %v44, 0
    %49 = vmatprep.subr.mxu0 0.0
    %50 = vmatpush1.msra.mxu0 0.0
    %51 = vmatprep.subr.mxu0 0.0
    %52 = vmatpush1.msra.mxu0 0.0
    %53 = vmatprep.subr.mxu0 0.0
    %54 = vmatpush1.msra.mxu0 0.0
    %55 = vmatprep.subr.mxu0 0.0
    %56 = vmatpush1.msra.mxu0 0.0
    %57 = vmatprep.subr.mxu0 0.0
    %58 = vmatpush1.msra.mxu0 0.0
    %59 = vmatprep.subr.mxu0 0.0
    %60 = vmatpush1.msra.mxu0 0.0
    %61 = vmatprep.subr.mxu0 0.0
    %62 = vmatpush1.msra.mxu0 0.0
    %63 = vmatprep.subr.mxu0 0.0
    %64 = vmatpush1.msra.mxu0 0.0
    %65 = vmatprep.subr.mxu0 0.0
    %66 = vmatpush1.msra.mxu0 0.0
    %67 = vmatprep.subr.mxu0 0.0
    %68 = vmatpush1.msra.mxu0 0.0
    %69 = vmatprep.subr.mxu0 0.0
    %70 = vmatpush1.msra.mxu0 0.0
    %71 = vmatprep.subr.mxu0 0.0
    %72 = vmatpush1.msra.mxu0 0.0
    %73 = vmatprep.subr.mxu0 0.0
    %74 = vmatpush1.msra.mxu0 0.0
    %75 = vmatprep.subr.mxu0 0.0
    %76 = vmatpush1.msra.mxu0 0.0
    %77 = vmatprep.subr.mxu0 0.0
    %78 = vmatpush1.msra.mxu0 %v42
    %79 = vmatprep.subr.mxu0 0.0
    %80 = vmatpush1.msra.mxu0 %v41
    %81 = vmatprep.subr.mxu0 0.0
    %82 = vmatpush2.msra.mxu0 0.0
    %83 = vmatprep.subr.mxu0 0.0
    %84 = vmatpush2.msra.mxu0 0.0
    %85 = vmatprep.subr.mxu0 0.0
    %86 = vmatpush2.msra.mxu0 0.0
    %87 = vmatprep.subr.mxu0 0.0
    %88 = vmatpush2.msra.mxu0 0.0
    %89 = vmatprep.subr.mxu0 0.0
    %90 = vmatpush2.msra.mxu0 0.0
    %91 = vmatprep.subr.mxu0 0.0
    %92 = vmatpush2.msra.mxu0 0.0
    %93 = vmatprep.subr.mxu0 0.0
    %94 = vmatpush2.msra.mxu0 0.0
    %95 = vmatprep.subr.mxu0 0.0
    %96 = vmatpush2.msra.mxu0 0.0
    %97 = vmatprep.subr.mxu0 0.0
    %98 = vmatpush2.msra.mxu0 0.0
    %99 = vmatprep.subr.mxu0 0.0
    %100 = vmatpush2.msra.mxu0 0.0
    %101 = vmatprep.subr.mxu0 0.0
    %102 = vmatpush2.msra.mxu0 0.0
    %103 = vmatprep.subr.mxu0 0.0
    %104 = vmatpush2.msra.mxu0 0.0
    %105 = vmatprep.subr.mxu0 0.0
    %106 = vmatpush2.msra.mxu0 0.0
    %107 = vmatprep.subr.mxu0 0.0
    %108 = vmatpush2.msra.mxu0 0.0
    %109 = vmatprep.subr.mxu0 0.0
    %110 = vmatpush2.msra.mxu0 0.0
    %111 = vmatprep.subr.mxu0 0.0
    %112 = vmatpush2.msra.mxu0 0.0
    %113 = vmatprep.mubr.f32.mxu0 0.0
    %114 = vmatmul.mubr.f32.gmra.mxu0 %v47
    %v115 = vpop.f32.mrf.mxu0
    %v116 = vadd.f32 0.0, %v115
    %v117 = vpop.f32.mrf.mxu0
    %118 = vdwg.mxu0
    %vm119 = vcmask 15360
    %v121 = vsel %vm119, %v116, 0
    %vm123 = vcmask 1041408
    %v125 = vsel %vm123, %v43, 0
    %127 = vmatprep.subr.mxu0 0.0
    %128 = vmatpush1.msra.mxu0 0.0
    %129 = vmatprep.subr.mxu0 0.0
    %130 = vmatpush1.msra.mxu0 0.0
    %131 = vmatprep.subr.mxu0 0.0
    %132 = vmatpush1.msra.mxu0 0.0
    %133 = vmatprep.subr.mxu0 0.0
    %134 = vmatpush1.msra.mxu0 0.0
    %135 = vmatprep.subr.mxu0 0.0
    %136 = vmatpush1.msra.mxu0 0.0
    %137 = vmatprep.subr.mxu0 0.0
    %138 = vmatpush1.msra.mxu0 0.0
    %139 = vmatprep.subr.mxu0 0.0
    %140 = vmatpush1.msra.mxu0 0.0
    %141 = vmatprep.subr.mxu0 0.0
    %142 = vmatpush1.msra.mxu0 0.0
    %143 = vmatprep.subr.mxu0 0.0
    %144 = vmatpush1.msra.mxu0 0.0
    %145 = vmatprep.subr.mxu0 0.0
    %146 = vmatpush1.msra.mxu0 0.0
    %147 = vmatprep.subr.mxu0 0.0
    %148 = vmatpush1.msra.mxu0 0.0
    %149 = vmatprep.subr.mxu0 0.0
    %150 = vmatpush1.msra.mxu0 0.0
    %151 = vmatprep.subr.mxu0 0.0
    %152 = vmatpush1.msra.mxu0 0.0
    %153 = vmatprep.subr.mxu0 0.0
    %154 = vmatpush1.msra.mxu0 0.0
    %155 = vmatprep.subr.mxu0 0.0
    %156 = vmatpush1.msra.mxu0 0.0
    %157 = vmatprep.subr.mxu0 0.0
    %158 = vmatpush1.msra.mxu0 %v125
    %159 = vmatprep.subr.mxu0 0.0
    %160 = vmatpush2.msra.mxu0 0.0
    %161 = vmatprep.subr.mxu0 0.0
    %162 = vmatpush2.msra.mxu0 0.0
    %163 = vmatprep.subr.mxu0 0.0
    %164 = vmatpush2.msra.mxu0 0.0
    %165 = vmatprep.subr.mxu0 0.0
    %166 = vmatpush2.msra.mxu0 0.0
    %167 = vmatprep.subr.mxu0 0.0
    %168 = vmatpush2.msra.mxu0 0.0
    %169 = vmatprep.subr.mxu0 0.0
    %170 = vmatpush2.msra.mxu0 0.0
    %171 = vmatprep.subr.mxu0 0.0
    %172 = vmatpush2.msra.mxu0 0.0
    %173 = vmatprep.subr.mxu0 0.0
    %174 = vmatpush2.msra.mxu0 0.0
    %175 = vmatprep.subr.mxu0 0.0
    %176 = vmatpush2.msra.mxu0 0.0
    %177 = vmatprep.subr.mxu0 0.0
    %178 = vmatpush2.msra.mxu0 0.0
    %179 = vmatprep.subr.mxu0 0.0
    %180 = vmatpush2.msra.mxu0 0.0
    %181 = vmatprep.subr.mxu0 0.0
    %182 = vmatpush2.msra.mxu0 0.0
    %183 = vmatprep.subr.mxu0 0.0
    %184 = vmatpush2.msra.mxu0 0.0
    %185 = vmatprep.subr.mxu0 0.0
    %186 = vmatpush2.msra.mxu0 0.0
    %187 = vmatprep.subr.mxu0 0.0
    %188 = vmatpush2.msra.mxu0 0.0
    %189 = vmatprep.subr.mxu0 0.0
    %190 = vmatpush2.msra.mxu0 0.0
    %191 = vmatprep.mubr.f32.mxu0 0.0
    %192 = vmatmul.mubr.f32.gmra.mxu0 %v121
    %v193 = vpop.f32.mrf.mxu0
    %v194 = vadd.f32 0.0, %v193
    %v195 = vpop.f32.mrf.mxu0
    %196 = vdwg.mxu0
    %v197 = vsub.f32 %v39, %v194
    %v198 = vsub.f32 %v40, %v194
    %v199 = vmul.f32 %v197, %v197
    %v200 = vmul.f32 %v198, %v198
    %v201 = vadd.f32 %v199, %v200
    %v203 = vsel %vm45, %v201, 0
    %205 = vmatprep.subr.mxu0 0.0
    %206 = vmatpush1.msra.mxu0 0.0
    %207 = vmatprep.subr.mxu0 0.0
    %208 = vmatpush1.msra.mxu0 0.0
    %209 = vmatprep.subr.mxu0 0.0
    %210 = vmatpush1.msra.mxu0 0.0
    %211 = vmatprep.subr.mxu0 0.0
    %212 = vmatpush1.msra.mxu0 0.0
    %213 = vmatprep.subr.mxu0 0.0
    %214 = vmatpush1.msra.mxu0 0.0
    %215 = vmatprep.subr.mxu0 0.0
    %216 = vmatpush1.msra.mxu0 0.0
    %217 = vmatprep.subr.mxu0 0.0
    %218 = vmatpush1.msra.mxu0 0.0
    %219 = vmatprep.subr.mxu0 0.0
    %220 = vmatpush1.msra.mxu0 0.0
    %221 = vmatprep.subr.mxu0 0.0
    %222 = vmatpush1.msra.mxu0 0.0
    %223 = vmatprep.subr.mxu0 0.0
    %224 = vmatpush1.msra.mxu0 0.0
    %225 = vmatprep.subr.mxu0 0.0
    %226 = vmatpush1.msra.mxu0 0.0
    %227 = vmatprep.subr.mxu0 0.0
    %228 = vmatpush1.msra.mxu0 0.0
    %229 = vmatprep.subr.mxu0 0.0
    %230 = vmatpush1.msra.mxu0 0.0
    %231 = vmatprep.subr.mxu0 0.0
    %232 = vmatpush1.msra.mxu0 0.0
    %233 = vmatprep.subr.mxu0 0.0
    %234 = vmatpush1.msra.mxu0 %v42
    %235 = vmatprep.subr.mxu0 0.0
    %236 = vmatpush1.msra.mxu0 %v41
    %237 = vmatprep.subr.mxu0 0.0
    %238 = vmatpush2.msra.mxu0 0.0
    %239 = vmatprep.subr.mxu0 0.0
    %240 = vmatpush2.msra.mxu0 0.0
    %241 = vmatprep.subr.mxu0 0.0
    %242 = vmatpush2.msra.mxu0 0.0
    %243 = vmatprep.subr.mxu0 0.0
    %244 = vmatpush2.msra.mxu0 0.0
    %245 = vmatprep.subr.mxu0 0.0
    %246 = vmatpush2.msra.mxu0 0.0
    %247 = vmatprep.subr.mxu0 0.0
    %248 = vmatpush2.msra.mxu0 0.0
    %249 = vmatprep.subr.mxu0 0.0
    %250 = vmatpush2.msra.mxu0 0.0
    %251 = vmatprep.subr.mxu0 0.0
    %252 = vmatpush2.msra.mxu0 0.0
    %253 = vmatprep.subr.mxu0 0.0
    %254 = vmatpush2.msra.mxu0 0.0
    %255 = vmatprep.subr.mxu0 0.0
    %256 = vmatpush2.msra.mxu0 0.0
    %257 = vmatprep.subr.mxu0 0.0
    %258 = vmatpush2.msra.mxu0 0.0
    %259 = vmatprep.subr.mxu0 0.0
    %260 = vmatpush2.msra.mxu0 0.0
    %261 = vmatprep.subr.mxu0 0.0
    %262 = vmatpush2.msra.mxu0 0.0
    %263 = vmatprep.subr.mxu0 0.0
    %264 = vmatpush2.msra.mxu0 0.0
    %265 = vmatprep.subr.mxu0 0.0
    %266 = vmatpush2.msra.mxu0 0.0
    %267 = vmatprep.subr.mxu0 0.0
    %268 = vmatpush2.msra.mxu0 0.0
    %269 = vmatprep.mubr.f32.mxu0 0.0
    %270 = vmatmul.mubr.f32.gmra.mxu0 %v203
    %v271 = vpop.f32.mrf.mxu0
    %v272 = vadd.f32 1e-05, %v271
    %v273 = vpop.f32.mrf.mxu0
    %274 = vdwg.mxu0
    %v275 = vrsqrt.pop %v272
    %v277 = vsel %vm119, %v275, 0
    %279 = vmatprep.subr.mxu0 0.0
    %280 = vmatpush1.msra.mxu0 0.0
    %281 = vmatprep.subr.mxu0 0.0
    %282 = vmatpush1.msra.mxu0 0.0
    %283 = vmatprep.subr.mxu0 0.0
    %284 = vmatpush1.msra.mxu0 0.0
    %285 = vmatprep.subr.mxu0 0.0
    %286 = vmatpush1.msra.mxu0 0.0
    %287 = vmatprep.subr.mxu0 0.0
    %288 = vmatpush1.msra.mxu0 0.0
    %289 = vmatprep.subr.mxu0 0.0
    %290 = vmatpush1.msra.mxu0 0.0
    %291 = vmatprep.subr.mxu0 0.0
    %292 = vmatpush1.msra.mxu0 0.0
    %293 = vmatprep.subr.mxu0 0.0
    %294 = vmatpush1.msra.mxu0 0.0
    %295 = vmatprep.subr.mxu0 0.0
    %296 = vmatpush1.msra.mxu0 0.0
    %297 = vmatprep.subr.mxu0 0.0
    %298 = vmatpush1.msra.mxu0 0.0
    %299 = vmatprep.subr.mxu0 0.0
    %300 = vmatpush1.msra.mxu0 0.0
    %301 = vmatprep.subr.mxu0 0.0
    %302 = vmatpush1.msra.mxu0 0.0
    %303 = vmatprep.subr.mxu0 0.0
    %304 = vmatpush1.msra.mxu0 0.0
    %305 = vmatprep.subr.mxu0 0.0
    %306 = vmatpush1.msra.mxu0 0.0
    %307 = vmatprep.subr.mxu0 0.0
    %308 = vmatpush1.msra.mxu0 0.0
    %309 = vmatprep.subr.mxu0 0.0
    %310 = vmatpush1.msra.mxu0 %v125
    %311 = vmatprep.subr.mxu0 0.0
    %312 = vmatpush2.msra.mxu0 0.0
    %313 = vmatprep.subr.mxu0 0.0
    %314 = vmatpush2.msra.mxu0 0.0
    %315 = vmatprep.subr.mxu0 0.0
    %316 = vmatpush2.msra.mxu0 0.0
    %317 = vmatprep.subr.mxu0 0.0
    %318 = vmatpush2.msra.mxu0 0.0
    %319 = vmatprep.subr.mxu0 0.0
    %320 = vmatpush2.msra.mxu0 0.0
    %321 = vmatprep.subr.mxu0 0.0
    %322 = vmatpush2.msra.mxu0 0.0
    %323 = vmatprep.subr.mxu0 0.0
    %324 = vmatpush2.msra.mxu0 0.0
    %325 = vmatprep.subr.mxu0 0.0
    %326 = vmatpush2.msra.mxu0 0.0
    %327 = vmatprep.subr.mxu0 0.0
    %328 = vmatpush2.msra.mxu0 0.0
    %329 = vmatprep.subr.mxu0 0.0
    %330 = vmatpush2.msra.mxu0 0.0
    %331 = vmatprep.subr.mxu0 0.0
    %332 = vmatpush2.msra.mxu0 0.0
    %333 = vmatprep.subr.mxu0 0.0
    %334 = vmatpush2.msra.mxu0 0.0
    %335 = vmatprep.subr.mxu0 0.0
    %336 = vmatpush2.msra.mxu0 0.0
    %337 = vmatprep.subr.mxu0 0.0
    %338 = vmatpush2.msra.mxu0 0.0
    %339 = vmatprep.subr.mxu0 0.0
    %340 = vmatpush2.msra.mxu0 0.0
    %341 = vmatprep.subr.mxu0 0.0
    %342 = vmatpush2.msra.mxu0 0.0
    %343 = vmatprep.mubr.f32.mxu0 0.0
    %344 = vmatmul.mubr.f32.gmra.mxu0 %v277
    %v345 = vpop.f32.mrf.mxu0
    %v346 = vadd.f32 0.0, %v345
    %v347 = vpop.f32.mrf.mxu0
    %348 = vdwg.mxu0
    %v349 = vmul.f32 %v197, %v346
    %v350 = vmul.f32 %v198, %v346
    %vm351 = vcmask 1047680
    %352 = vrot.lane.b32.xlu0 %v349, 16
    %v353 = vpop.permute.xlu0 %352
    %v354 = vsel %vm351, %v353, %v349
    %355 = vrot.lane.b32.xlu0 %v354, 16
    %v356 = vpop.permute.xlu0 %355
    %v357 = vsel %vm351, %v356, %v349
    %v358 = vld [vmem:[%s2] sm:$0xff]
    %360 = vrot.lane.b32.xlu0 %v358, 124
    %v361 = vpop.permute.xlu0 %360
    %vm362 = vcmask 31744
    %v363 = vsel %vm362, %v361, 0
    %vm365 = vcmask 1043456
    %v367 = vsel %vm365, %v350, 0
    %369 = vmatprep.subr.mxu0 0.0
    %370 = vmatpush1.msra.mxu0 0.0
    %371 = vmatprep.subr.mxu0 0.0
    %372 = vmatpush1.msra.mxu0 0.0
    %373 = vmatprep.subr.mxu0 0.0
    %374 = vmatpush1.msra.mxu0 0.0
    %375 = vmatprep.subr.mxu0 0.0
    %376 = vmatpush1.msra.mxu0 0.0
    %377 = vmatprep.subr.mxu0 0.0
    %378 = vmatpush1.msra.mxu0 0.0
    %379 = vmatprep.subr.mxu0 0.0
    %380 = vmatpush1.msra.mxu0 0.0
    %381 = vmatprep.subr.mxu0 0.0
    %382 = vmatpush1.msra.mxu0 0.0
    %383 = vmatprep.subr.mxu0 0.0
    %384 = vmatpush1.msra.mxu0 0.0
    %385 = vmatprep.subr.mxu0 0.0
    %386 = vmatpush1.msra.mxu0 0.0
    %387 = vmatprep.subr.mxu0 0.0
    %388 = vmatpush1.msra.mxu0 0.0
    %389 = vmatprep.subr.mxu0 0.0
    %390 = vmatpush1.msra.mxu0 0.0
    %391 = vmatprep.subr.mxu0 0.0
    %392 = vmatpush1.msra.mxu0 0.0
    %393 = vmatprep.subr.mxu0 0.0
    %394 = vmatpush1.msra.mxu0 0.0
    %395 = vmatprep.subr.mxu0 0.0
    %396 = vmatpush1.msra.mxu0 0.0
    %397 = vmatprep.subr.mxu0 0.0
    %398 = vmatpush1.msra.mxu0 0.0
    %399 = vmatprep.subr.mxu0 0.0
    %400 = vmatpush1.msra.mxu0 %v367
    %401 = vmatprep.subr.mxu0 0.0
    %402 = vmatpush2.msra.mxu0 0.0
    %403 = vmatprep.subr.mxu0 0.0
    %404 = vmatpush2.msra.mxu0 0.0
    %405 = vmatprep.subr.mxu0 0.0
    %406 = vmatpush2.msra.mxu0 0.0
    %407 = vmatprep.subr.mxu0 0.0
    %408 = vmatpush2.msra.mxu0 0.0
    %409 = vmatprep.subr.mxu0 0.0
    %410 = vmatpush2.msra.mxu0 0.0
    %411 = vmatprep.subr.mxu0 0.0
    %412 = vmatpush2.msra.mxu0 0.0
    %413 = vmatprep.subr.mxu0 0.0
    %414 = vmatpush2.msra.mxu0 0.0
    %415 = vmatprep.subr.mxu0 0.0
    %416 = vmatpush2.msra.mxu0 0.0
    %417 = vmatprep.subr.mxu0 0.0
    %418 = vmatpush2.msra.mxu0 0.0
    %419 = vmatprep.subr.mxu0 0.0
    %420 = vmatpush2.msra.mxu0 0.0
    %421 = vmatprep.subr.mxu0 0.0
    %422 = vmatpush2.msra.mxu0 0.0
    %423 = vmatprep.subr.mxu0 0.0
    %424 = vmatpush2.msra.mxu0 0.0
    %425 = vmatprep.subr.mxu0 0.0
    %426 = vmatpush2.msra.mxu0 0.0
    %427 = vmatprep.subr.mxu0 0.0
    %428 = vmatpush2.msra.mxu0 0.0
    %429 = vmatprep.subr.mxu0 0.0
    %430 = vmatpush2.msra.mxu0 0.0
    %431 = vmatprep.subr.mxu0 0.0
    %432 = vmatpush2.msra.mxu0 0.0
    %433 = vmatprep.mubr.f32.mxu0 0.0
    %434 = vmatmul.mubr.f32.gmra.mxu0 %v363
    %v435 = vpop.f32.mrf.mxu0
    %v436 = vadd.f32 0.0, %v435
    %v437 = vpop.f32.mrf.mxu0
    %438 = vdwg.mxu0
    %v439 = vsel %vm362, %v358, 0
    %v442 = vsel %vm365, %v349, 0
    %444 = vmatprep.subr.mxu0 0.0
    %445 = vmatpush1.msra.mxu0 0.0
    %446 = vmatprep.subr.mxu0 0.0
    %447 = vmatpush1.msra.mxu0 0.0
    %448 = vmatprep.subr.mxu0 0.0
    %449 = vmatpush1.msra.mxu0 0.0
    %450 = vmatprep.subr.mxu0 0.0
    %451 = vmatpush1.msra.mxu0 0.0
    %452 = vmatprep.subr.mxu0 0.0
    %453 = vmatpush1.msra.mxu0 0.0
    %454 = vmatprep.subr.mxu0 0.0
    %455 = vmatpush1.msra.mxu0 0.0
    %456 = vmatprep.subr.mxu0 0.0
    %457 = vmatpush1.msra.mxu0 0.0
    %458 = vmatprep.subr.mxu0 0.0
    %459 = vmatpush1.msra.mxu0 0.0
    %460 = vmatprep.subr.mxu0 0.0
    %461 = vmatpush1.msra.mxu0 0.0
    %462 = vmatprep.subr.mxu0 0.0
    %463 = vmatpush1.msra.mxu0 0.0
    %464 = vmatprep.subr.mxu0 0.0
    %465 = vmatpush1.msra.mxu0 0.0
    %466 = vmatprep.subr.mxu0 0.0
    %467 = vmatpush1.msra.mxu0 0.0
    %468 = vmatprep.subr.mxu0 0.0
    %469 = vmatpush1.msra.mxu0 0.0
    %470 = vmatprep.subr.mxu0 0.0
    %471 = vmatpush1.msra.mxu0 0.0
    %472 = vmatprep.subr.mxu0 0.0
    %473 = vmatpush1.msra.mxu0 0.0
    %474 = vmatprep.subr.mxu0 0.0
    %475 = vmatpush1.msra.mxu0 %v442
    %476 = vmatprep.subr.mxu0 0.0
    %477 = vmatpush2.msra.mxu0 0.0
    %478 = vmatprep.subr.mxu0 0.0
    %479 = vmatpush2.msra.mxu0 0.0
    %480 = vmatprep.subr.mxu0 0.0
    %481 = vmatpush2.msra.mxu0 0.0
    %482 = vmatprep.subr.mxu0 0.0
    %483 = vmatpush2.msra.mxu0 0.0
    %484 = vmatprep.subr.mxu0 0.0
    %485 = vmatpush2.msra.mxu0 0.0
    %486 = vmatprep.subr.mxu0 0.0
    %487 = vmatpush2.msra.mxu0 0.0
    %488 = vmatprep.subr.mxu0 0.0
    %489 = vmatpush2.msra.mxu0 0.0
    %490 = vmatprep.subr.mxu0 0.0
    %491 = vmatpush2.msra.mxu0 0.0
    %492 = vmatprep.subr.mxu0 0.0
    %493 = vmatpush2.msra.mxu0 0.0
    %494 = vmatprep.subr.mxu0 0.0
    %495 = vmatpush2.msra.mxu0 0.0
    %496 = vmatprep.subr.mxu0 0.0
    %497 = vmatpush2.msra.mxu0 0.0
    %498 = vmatprep.subr.mxu0 0.0
    %499 = vmatpush2.msra.mxu0 0.0
    %500 = vmatprep.subr.mxu0 0.0
    %501 = vmatpush2.msra.mxu0 0.0
    %502 = vmatprep.subr.mxu0 0.0
    %503 = vmatpush2.msra.mxu0 0.0
    %504 = vmatprep.subr.mxu0 0.0
    %505 = vmatpush2.msra.mxu0 0.0
    %506 = vmatprep.subr.mxu0 0.0
    %507 = vmatpush2.msra.mxu0 0.0
    %508 = vmatprep.mubr.f32.mxu0 0.0
    %509 = vmatmul.mubr.f32.gmra.mxu0 %v439
    %v510 = vpop.f32.mrf.mxu0
    %v511 = vadd.f32 %v436, %v510
    %v512 = vpop.f32.mrf.mxu0
    %513 = vdwg.mxu0
    %514 = vrot.lane.b32.xlu0 %v358, 120
    %v515 = vpop.permute.xlu0 %514
    %517 = vrot.lane.b32.xlu0 %v357, 127
    %v518 = vpop.permute.xlu0 %517
    %v519 = vsel %vm362, %v515, 0
    %v521 = vsel %vm365, %v518, 0
    %523 = vmatprep.subr.mxu0 0.0
    %524 = vmatpush1.msra.mxu0 0.0
    %525 = vmatprep.subr.mxu0 0.0
    %526 = vmatpush1.msra.mxu0 0.0
    %527 = vmatprep.subr.mxu0 0.0
    %528 = vmatpush1.msra.mxu0 0.0
    %529 = vmatprep.subr.mxu0 0.0
    %530 = vmatpush1.msra.mxu0 0.0
    %531 = vmatprep.subr.mxu0 0.0
    %532 = vmatpush1.msra.mxu0 0.0
    %533 = vmatprep.subr.mxu0 0.0
    %534 = vmatpush1.msra.mxu0 0.0
    %535 = vmatprep.subr.mxu0 0.0
    %536 = vmatpush1.msra.mxu0 0.0
    %537 = vmatprep.subr.mxu0 0.0
    %538 = vmatpush1.msra.mxu0 0.0
    %539 = vmatprep.subr.mxu0 0.0
    %540 = vmatpush1.msra.mxu0 0.0
    %541 = vmatprep.subr.mxu0 0.0
    %542 = vmatpush1.msra.mxu0 0.0
    %543 = vmatprep.subr.mxu0 0.0
    %544 = vmatpush1.msra.mxu0 0.0
    %545 = vmatprep.subr.mxu0 0.0
    %546 = vmatpush1.msra.mxu0 0.0
    %547 = vmatprep.subr.mxu0 0.0
    %548 = vmatpush1.msra.mxu0 0.0
    %549 = vmatprep.subr.mxu0 0.0
    %550 = vmatpush1.msra.mxu0 0.0
    %551 = vmatprep.subr.mxu0 0.0
    %552 = vmatpush1.msra.mxu0 0.0
    %553 = vmatprep.subr.mxu0 0.0
    %554 = vmatpush1.msra.mxu0 %v521
    %555 = vmatprep.subr.mxu0 0.0
    %556 = vmatpush2.msra.mxu0 0.0
    %557 = vmatprep.subr.mxu0 0.0
    %558 = vmatpush2.msra.mxu0 0.0
    %559 = vmatprep.subr.mxu0 0.0
    %560 = vmatpush2.msra.mxu0 0.0
    %561 = vmatprep.subr.mxu0 0.0
    %562 = vmatpush2.msra.mxu0 0.0
    %563 = vmatprep.subr.mxu0 0.0
    %564 = vmatpush2.msra.mxu0 0.0
    %565 = vmatprep.subr.mxu0 0.0
    %566 = vmatpush2.msra.mxu0 0.0
    %567 = vmatprep.subr.mxu0 0.0
    %568 = vmatpush2.msra.mxu0 0.0
    %569 = vmatprep.subr.mxu0 0.0
    %570 = vmatpush2.msra.mxu0 0.0
    %571 = vmatprep.subr.mxu0 0.0
    %572 = vmatpush2.msra.mxu0 0.0
    %573 = vmatprep.subr.mxu0 0.0
    %574 = vmatpush2.msra.mxu0 0.0
    %575 = vmatprep.subr.mxu0 0.0
    %576 = vmatpush2.msra.mxu0 0.0
    %577 = vmatprep.subr.mxu0 0.0
    %578 = vmatpush2.msra.mxu0 0.0
    %579 = vmatprep.subr.mxu0 0.0
    %580 = vmatpush2.msra.mxu0 0.0
    %581 = vmatprep.subr.mxu0 0.0
    %582 = vmatpush2.msra.mxu0 0.0
    %583 = vmatprep.subr.mxu0 0.0
    %584 = vmatpush2.msra.mxu0 0.0
    %585 = vmatprep.subr.mxu0 0.0
    %586 = vmatpush2.msra.mxu0 0.0
    %587 = vmatprep.mubr.f32.mxu0 0.0
    %588 = vmatmul.mubr.f32.gmra.mxu0 %v519
    %v589 = vpop.f32.mrf.mxu0
    %v590 = vadd.f32 0.0, %v589
    %v591 = vpop.f32.mrf.mxu0
    %592 = vdwg.mxu0
    %v593 = vadd.f32 %v511, %v590
    %v594 = vld [vmem:[%s3] sm:$0xff]
    %596 = vset.pattern.permute.xlu0 0
    %597 = vperm.xlu0 %596, %v594
    %v598 = vpop.permute.xlu0 %597
    %v600 = vadd.f32 %v593, %v598
    %v601 = vmax.f32 %v600, 0.0
    %v602 = vld [vmem:[%s8] sm:$0xff]
    %v603 = vld [vmem:[%s8 + $0x8] sm:$0xff]
    %v605 = vsel %vm45, %v601, 0
    %607 = vmatprep.subr.mxu0 0.0
    %608 = vmatpush1.msra.mxu0 0.0
    %609 = vmatprep.subr.mxu0 0.0
    %610 = vmatpush1.msra.mxu0 0.0
    %611 = vmatprep.subr.mxu0 0.0
    %612 = vmatpush1.msra.mxu0 0.0
    %613 = vmatprep.subr.mxu0 0.0
    %614 = vmatpush1.msra.mxu0 0.0
    %615 = vmatprep.subr.mxu0 0.0
    %616 = vmatpush1.msra.mxu0 0.0
    %617 = vmatprep.subr.mxu0 0.0
    %618 = vmatpush1.msra.mxu0 0.0
    %619 = vmatprep.subr.mxu0 0.0
    %620 = vmatpush1.msra.mxu0 0.0
    %621 = vmatprep.subr.mxu0 0.0
    %622 = vmatpush1.msra.mxu0 0.0
    %623 = vmatprep.subr.mxu0 0.0
    %624 = vmatpush1.msra.mxu0 0.0
    %625 = vmatprep.subr.mxu0 0.0
    %626 = vmatpush1.msra.mxu0 0.0
    %627 = vmatprep.subr.mxu0 0.0
    %628 = vmatpush1.msra.mxu0 0.0
    %629 = vmatprep.subr.mxu0 0.0
    %630 = vmatpush1.msra.mxu0 0.0
    %631 = vmatprep.subr.mxu0 0.0
    %632 = vmatpush1.msra.mxu0 0.0
    %633 = vmatprep.subr.mxu0 0.0
    %634 = vmatpush1.msra.mxu0 0.0
    %635 = vmatprep.subr.mxu0 0.0
    %636 = vmatpush1.msra.mxu0 %v603
    %637 = vmatprep.subr.mxu0 0.0
    %638 = vmatpush1.msra.mxu0 %v602
    %639 = vmatprep.subr.mxu0 0.0
    %640 = vmatpush2.msra.mxu0 0.0
    %641 = vmatprep.subr.mxu0 0.0
    %642 = vmatpush2.msra.mxu0 0.0
    %643 = vmatprep.subr.mxu0 0.0
    %644 = vmatpush2.msra.mxu0 0.0
    %645 = vmatprep.subr.mxu0 0.0
    %646 = vmatpush2.msra.mxu0 0.0
    %647 = vmatprep.subr.mxu0 0.0
    %648 = vmatpush2.msra.mxu0 0.0
    %649 = vmatprep.subr.mxu0 0.0
    %650 = vmatpush2.msra.mxu0 0.0
    %651 = vmatprep.subr.mxu0 0.0
    %652 = vmatpush2.msra.mxu0 0.0
    %653 = vmatprep.subr.mxu0 0.0
    %654 = vmatpush2.msra.mxu0 0.0
    %655 = vmatprep.subr.mxu0 0.0
    %656 = vmatpush2.msra.mxu0 0.0
    %657 = vmatprep.subr.mxu0 0.0
    %658 = vmatpush2.msra.mxu0 0.0
    %659 = vmatprep.subr.mxu0 0.0
    %660 = vmatpush2.msra.mxu0 0.0
    %661 = vmatprep.subr.mxu0 0.0
    %662 = vmatpush2.msra.mxu0 0.0
    %663 = vmatprep.subr.mxu0 0.0
    %664 = vmatpush2.msra.mxu0 0.0
    %665 = vmatprep.subr.mxu0 0.0
    %666 = vmatpush2.msra.mxu0 0.0
    %667 = vmatprep.subr.mxu0 0.0
    %668 = vmatpush2.msra.mxu0 0.0
    %669 = vmatprep.subr.mxu0 0.0
    %670 = vmatpush2.msra.mxu0 0.0
    %671 = vmatprep.mubr.f32.mxu0 0.0
    %672 = vmatmul.mubr.f32.gmra.mxu0 %v605
    %v673 = vpop.f32.mrf.mxu0
    %v674 = vadd.f32 0.0, %v673
    %v675 = vpop.f32.mrf.mxu0
    %676 = vdwg.mxu0
    %v678 = vsel %vm119, %v674, 0
    %680 = vmatprep.subr.mxu0 0.0
    %681 = vmatpush1.msra.mxu0 0.0
    %682 = vmatprep.subr.mxu0 0.0
    %683 = vmatpush1.msra.mxu0 0.0
    %684 = vmatprep.subr.mxu0 0.0
    %685 = vmatpush1.msra.mxu0 0.0
    %686 = vmatprep.subr.mxu0 0.0
    %687 = vmatpush1.msra.mxu0 0.0
    %688 = vmatprep.subr.mxu0 0.0
    %689 = vmatpush1.msra.mxu0 0.0
    %690 = vmatprep.subr.mxu0 0.0
    %691 = vmatpush1.msra.mxu0 0.0
    %692 = vmatprep.subr.mxu0 0.0
    %693 = vmatpush1.msra.mxu0 0.0
    %694 = vmatprep.subr.mxu0 0.0
    %695 = vmatpush1.msra.mxu0 0.0
    %696 = vmatprep.subr.mxu0 0.0
    %697 = vmatpush1.msra.mxu0 0.0
    %698 = vmatprep.subr.mxu0 0.0
    %699 = vmatpush1.msra.mxu0 0.0
    %700 = vmatprep.subr.mxu0 0.0
    %701 = vmatpush1.msra.mxu0 0.0
    %702 = vmatprep.subr.mxu0 0.0
    %703 = vmatpush1.msra.mxu0 0.0
    %704 = vmatprep.subr.mxu0 0.0
    %705 = vmatpush1.msra.mxu0 0.0
    %706 = vmatprep.subr.mxu0 0.0
    %707 = vmatpush1.msra.mxu0 0.0
    %708 = vmatprep.subr.mxu0 0.0
    %709 = vmatpush1.msra.mxu0 0.0
    %710 = vmatprep.subr.mxu0 0.0
    %711 = vmatpush1.msra.mxu0 %v125
    %712 = vmatprep.subr.mxu0 0.0
    %713 = vmatpush2.msra.mxu0 0.0
    %714 = vmatprep.subr.mxu0 0.0
    %715 = vmatpush2.msra.mxu0 0.0
    %716 = vmatprep.subr.mxu0 0.0
    %717 = vmatpush2.msra.mxu0 0.0
    %718 = vmatprep.subr.mxu0 0.0
    %719 = vmatpush2.msra.mxu0 0.0
    %720 = vmatprep.subr.mxu0 0.0
    %721 = vmatpush2.msra.mxu0 0.0
    %722 = vmatprep.subr.mxu0 0.0
    %723 = vmatpush2.msra.mxu0 0.0
    %724 = vmatprep.subr.mxu0 0.0
    %725 = vmatpush2.msra.mxu0 0.0
    %726 = vmatprep.subr.mxu0 0.0
    %727 = vmatpush2.msra.mxu0 0.0
    %728 = vmatprep.subr.mxu0 0.0
    %729 = vmatpush2.msra.mxu0 0.0
    %730 = vmatprep.subr.mxu0 0.0
    %731 = vmatpush2.msra.mxu0 0.0
    %732 = vmatprep.subr.mxu0 0.0
    %733 = vmatpush2.msra.mxu0 0.0
    %734 = vmatprep.subr.mxu0 0.0
    %735 = vmatpush2.msra.mxu0 0.0
    %736 = vmatprep.subr.mxu0 0.0
    %737 = vmatpush2.msra.mxu0 0.0
    %738 = vmatprep.subr.mxu0 0.0
    %739 = vmatpush2.msra.mxu0 0.0
    %740 = vmatprep.subr.mxu0 0.0
    %741 = vmatpush2.msra.mxu0 0.0
    %742 = vmatprep.subr.mxu0 0.0
    %743 = vmatpush2.msra.mxu0 0.0
    %744 = vmatprep.mubr.f32.mxu0 0.0
    %745 = vmatmul.mubr.f32.gmra.mxu0 %v678
    %v746 = vpop.f32.mrf.mxu0
    %v747 = vadd.f32 0.0, %v746
    %v748 = vpop.f32.mrf.mxu0
    %749 = vdwg.mxu0
    %v750 = vsub.f32 %v601, %v747
    %v751 = vmul.f32 %v750, %v750
    %v753 = vsel %vm45, %v751, 0
    %755 = vmatprep.subr.mxu0 0.0
    %756 = vmatpush1.msra.mxu0 0.0
    %757 = vmatprep.subr.mxu0 0.0
    %758 = vmatpush1.msra.mxu0 0.0
    %759 = vmatprep.subr.mxu0 0.0
    %760 = vmatpush1.msra.mxu0 0.0
    %761 = vmatprep.subr.mxu0 0.0
    %762 = vmatpush1.msra.mxu0 0.0
    %763 = vmatprep.subr.mxu0 0.0
    %764 = vmatpush1.msra.mxu0 0.0
    %765 = vmatprep.subr.mxu0 0.0
    %766 = vmatpush1.msra.mxu0 0.0
    %767 = vmatprep.subr.mxu0 0.0
    %768 = vmatpush1.msra.mxu0 0.0
    %769 = vmatprep.subr.mxu0 0.0
    %770 = vmatpush1.msra.mxu0 0.0
    %771 = vmatprep.subr.mxu0 0.0
    %772 = vmatpush1.msra.mxu0 0.0
    %773 = vmatprep.subr.mxu0 0.0
    %774 = vmatpush1.msra.mxu0 0.0
    %775 = vmatprep.subr.mxu0 0.0
    %776 = vmatpush1.msra.mxu0 0.0
    %777 = vmatprep.subr.mxu0 0.0
    %778 = vmatpush1.msra.mxu0 0.0
    %779 = vmatprep.subr.mxu0 0.0
    %780 = vmatpush1.msra.mxu0 0.0
    %781 = vmatprep.subr.mxu0 0.0
    %782 = vmatpush1.msra.mxu0 0.0
    %783 = vmatprep.subr.mxu0 0.0
    %784 = vmatpush1.msra.mxu0 %v603
    %785 = vmatprep.subr.mxu0 0.0
    %786 = vmatpush1.msra.mxu0 %v602
    %787 = vmatprep.subr.mxu0 0.0
    %788 = vmatpush2.msra.mxu0 0.0
    %789 = vmatprep.subr.mxu0 0.0
    %790 = vmatpush2.msra.mxu0 0.0
    %791 = vmatprep.subr.mxu0 0.0
    %792 = vmatpush2.msra.mxu0 0.0
    %793 = vmatprep.subr.mxu0 0.0
    %794 = vmatpush2.msra.mxu0 0.0
    %795 = vmatprep.subr.mxu0 0.0
    %796 = vmatpush2.msra.mxu0 0.0
    %797 = vmatprep.subr.mxu0 0.0
    %798 = vmatpush2.msra.mxu0 0.0
    %799 = vmatprep.subr.mxu0 0.0
    %800 = vmatpush2.msra.mxu0 0.0
    %801 = vmatprep.subr.mxu0 0.0
    %802 = vmatpush2.msra.mxu0 0.0
    %803 = vmatprep.subr.mxu0 0.0
    %804 = vmatpush2.msra.mxu0 0.0
    %805 = vmatprep.subr.mxu0 0.0
    %806 = vmatpush2.msra.mxu0 0.0
    %807 = vmatprep.subr.mxu0 0.0
    %808 = vmatpush2.msra.mxu0 0.0
    %809 = vmatprep.subr.mxu0 0.0
    %810 = vmatpush2.msra.mxu0 0.0
    %811 = vmatprep.subr.mxu0 0.0
    %812 = vmatpush2.msra.mxu0 0.0
    %813 = vmatprep.subr.mxu0 0.0
    %814 = vmatpush2.msra.mxu0 0.0
    %815 = vmatprep.subr.mxu0 0.0
    %816 = vmatpush2.msra.mxu0 0.0
    %817 = vmatprep.subr.mxu0 0.0
    %818 = vmatpush2.msra.mxu0 0.0
    %819 = vmatprep.mubr.f32.mxu0 0.0
    %820 = vmatmul.mubr.f32.gmra.mxu0 %v753
    %v821 = vpop.f32.mrf.mxu0
    %v822 = vadd.f32 1e-05, %v821
    %v823 = vpop.f32.mrf.mxu0
    %824 = vdwg.mxu0
    %v825 = vrsqrt.pop %v822
    %v827 = vsel %vm119, %v825, 0
    %829 = vmatprep.subr.mxu0 0.0
    %830 = vmatpush1.msra.mxu0 0.0
    %831 = vmatprep.subr.mxu0 0.0
    %832 = vmatpush1.msra.mxu0 0.0
    %833 = vmatprep.subr.mxu0 0.0
    %834 = vmatpush1.msra.mxu0 0.0
    %835 = vmatprep.subr.mxu0 0.0
    %836 = vmatpush1.msra.mxu0 0.0
    %837 = vmatprep.subr.mxu0 0.0
    %838 = vmatpush1.msra.mxu0 0.0
    %839 = vmatprep.subr.mxu0 0.0
    %840 = vmatpush1.msra.mxu0 0.0
    %841 = vmatprep.subr.mxu0 0.0
    %842 = vmatpush1.msra.mxu0 0.0
    %843 = vmatprep.subr.mxu0 0.0
    %844 = vmatpush1.msra.mxu0 0.0
    %845 = vmatprep.subr.mxu0 0.0
    %846 = vmatpush1.msra.mxu0 0.0
    %847 = vmatprep.subr.mxu0 0.0
    %848 = vmatpush1.msra.mxu0 0.0
    %849 = vmatprep.subr.mxu0 0.0
    %850 = vmatpush1.msra.mxu0 0.0
    %851 = vmatprep.subr.mxu0 0.0
    %852 = vmatpush1.msra.mxu0 0.0
    %853 = vmatprep.subr.mxu0 0.0
    %854 = vmatpush1.msra.mxu0 0.0
    %855 = vmatprep.subr.mxu0 0.0
    %856 = vmatpush1.msra.mxu0 0.0
    %857 = vmatprep.subr.mxu0 0.0
    %858 = vmatpush1.msra.mxu0 0.0
    %859 = vmatprep.subr.mxu0 0.0
    %860 = vmatpush1.msra.mxu0 %v125
    %861 = vmatprep.subr.mxu0 0.0
    %862 = vmatpush2.msra.mxu0 0.0
    %863 = vmatprep.subr.mxu0 0.0
    %864 = vmatpush2.msra.mxu0 0.0
    %865 = vmatprep.subr.mxu0 0.0
    %866 = vmatpush2.msra.mxu0 0.0
    %867 = vmatprep.subr.mxu0 0.0
    %868 = vmatpush2.msra.mxu0 0.0
    %869 = vmatprep.subr.mxu0 0.0
    %870 = vmatpush2.msra.mxu0 0.0
    %871 = vmatprep.subr.mxu0 0.0
    %872 = vmatpush2.msra.mxu0 0.0
    %873 = vmatprep.subr.mxu0 0.0
    %874 = vmatpush2.msra.mxu0 0.0
    %875 = vmatprep.subr.mxu0 0.0
    %876 = vmatpush2.msra.mxu0 0.0
    %877 = vmatprep.subr.mxu0 0.0
    %878 = vmatpush2.msra.mxu0 0.0
    %879 = vmatprep.subr.mxu0 0.0
    %880 = vmatpush2.msra.mxu0 0.0
    %881 = vmatprep.subr.mxu0 0.0
    %882 = vmatpush2.msra.mxu0 0.0
    %883 = vmatprep.subr.mxu0 0.0
    %884 = vmatpush2.msra.mxu0 0.0
    %885 = vmatprep.subr.mxu0 0.0
    %886 = vmatpush2.msra.mxu0 0.0
    %887 = vmatprep.subr.mxu0 0.0
    %888 = vmatpush2.msra.mxu0 0.0
    %889 = vmatprep.subr.mxu0 0.0
    %890 = vmatpush2.msra.mxu0 0.0
    %891 = vmatprep.subr.mxu0 0.0
    %892 = vmatpush2.msra.mxu0 0.0
    %893 = vmatprep.mubr.f32.mxu0 0.0
    %894 = vmatmul.mubr.f32.gmra.mxu0 %v827
    %v895 = vpop.f32.mrf.mxu0
    %v896 = vadd.f32 0.0, %v895
    %v897 = vpop.f32.mrf.mxu0
    %898 = vdwg.mxu0
    %v899 = vmul.f32 %v750, %v896
    %v900 = vlaneseq
    %v901 = vand.u32 %v900, 127
    %v902 = vand.u32 %v901, 7
    %903 = vrot.lane.b32.xlu0 %v899, 16
    %v904 = vpop.permute.xlu0 %903
    %v905 = vsel %vm351, %v904, %v899
    %906 = vrot.lane.b32.xlu0 %v905, 16
    %v907 = vpop.permute.xlu0 %906
    %v908 = vsel %vm351, %v907, %v899
    %v909 = vadd.s32 %v902, 4294967295
    %vm910 = vcmp.ge.s32.totalorder %v909, 0
    %vm911 = vcmp.lt.s32.totalorder %v909, 7
    %vm912 = vmand %vm910, %vm911
    %v913 = vsel %vm912, 1, 0
    %vm914 = vcmp.eq.s32.totalorder %v913, 1
    %916 = vrot.lane.b32.xlu0 %v908, 113
    %v917 = vpop.permute.xlu0 %916
    %v919 = vsel %vm914, %v917, 0.0
    %v920 = vadd.s32 %v902, 1
    %vm921 = vcmp.ge.s32.totalorder %v920, 0
    %vm922 = vcmp.lt.s32.totalorder %v920, 7
    %vm923 = vmand %vm921, %vm922
    %v924 = vsel %vm923, 1, 0
    %vm925 = vcmp.eq.s32.totalorder %v924, 1
    %926 = vrot.lane.b32.xlu0 %v908, 127
    %v927 = vpop.permute.xlu0 %926
    %v929 = vsel %vm925, %v927, 0.0
    %v930 = vld [vmem:[%s6] sm:$0xff]
    %v931 = vld [vmem:[%s7] sm:$0xff]
    %933 = vset.pattern.permute.xlu0 0
    %934 = vperm.xlu0 %933, %v931
    %v935 = vpop.permute.xlu0 %934
    %vm937 = vcmask 195584
    %v939 = vsel %vm937, %v930, 0
    %941 = vmatprep.subr.mxu0 0.0
    %942 = vmatpush1.msra.mxu0 0.0
    %943 = vmatprep.subr.mxu0 0.0
    %944 = vmatpush1.msra.mxu0 0.0
    %945 = vmatprep.subr.mxu0 0.0
    %946 = vmatpush1.msra.mxu0 0.0
    %947 = vmatprep.subr.mxu0 0.0
    %948 = vmatpush1.msra.mxu0 0.0
    %949 = vmatprep.subr.mxu0 0.0
    %950 = vmatpush1.msra.mxu0 0.0
    %951 = vmatprep.subr.mxu0 0.0
    %952 = vmatpush1.msra.mxu0 0.0
    %953 = vmatprep.subr.mxu0 0.0
    %954 = vmatpush1.msra.mxu0 0.0
    %955 = vmatprep.subr.mxu0 0.0
    %956 = vmatpush1.msra.mxu0 0.0
    %957 = vmatprep.subr.mxu0 0.0
    %958 = vmatpush1.msra.mxu0 0.0
    %959 = vmatprep.subr.mxu0 0.0
    %960 = vmatpush1.msra.mxu0 0.0
    %961 = vmatprep.subr.mxu0 0.0
    %962 = vmatpush1.msra.mxu0 0.0
    %963 = vmatprep.subr.mxu0 0.0
    %964 = vmatpush1.msra.mxu0 0.0
    %965 = vmatprep.subr.mxu0 0.0
    %966 = vmatpush1.msra.mxu0 0.0
    %967 = vmatprep.subr.mxu0 0.0
    %968 = vmatpush1.msra.mxu0 %v929
    %969 = vmatprep.subr.mxu0 0.0
    %970 = vmatpush1.msra.mxu0 %v899
    %971 = vmatprep.subr.mxu0 0.0
    %972 = vmatpush1.msra.mxu0 %v919
    %973 = vmatprep.subr.mxu0 0.0
    %974 = vmatpush2.msra.mxu0 0.0
    %975 = vmatprep.subr.mxu0 0.0
    %976 = vmatpush2.msra.mxu0 0.0
    %977 = vmatprep.subr.mxu0 0.0
    %978 = vmatpush2.msra.mxu0 0.0
    %979 = vmatprep.subr.mxu0 0.0
    %980 = vmatpush2.msra.mxu0 0.0
    %981 = vmatprep.subr.mxu0 0.0
    %982 = vmatpush2.msra.mxu0 0.0
    %983 = vmatprep.subr.mxu0 0.0
    %984 = vmatpush2.msra.mxu0 0.0
    %985 = vmatprep.subr.mxu0 0.0
    %986 = vmatpush2.msra.mxu0 0.0
    %987 = vmatprep.subr.mxu0 0.0
    %988 = vmatpush2.msra.mxu0 0.0
    %989 = vmatprep.subr.mxu0 0.0
    %990 = vmatpush2.msra.mxu0 0.0
    %991 = vmatprep.subr.mxu0 0.0
    %992 = vmatpush2.msra.mxu0 0.0
    %993 = vmatprep.subr.mxu0 0.0
    %994 = vmatpush2.msra.mxu0 0.0
    %995 = vmatprep.subr.mxu0 0.0
    %996 = vmatpush2.msra.mxu0 0.0
    %997 = vmatprep.subr.mxu0 0.0
    %998 = vmatpush2.msra.mxu0 0.0
    %999 = vmatprep.subr.mxu0 0.0
    %1000 = vmatpush2.msra.mxu0 0.0
    %1001 = vmatprep.subr.mxu0 0.0
    %1002 = vmatpush2.msra.mxu0 0.0
    %1003 = vmatprep.subr.mxu0 0.0
    %1004 = vmatpush2.msra.mxu0 0.0
    %1005 = vmatprep.mubr.f32.mxu0 0.0
    %1006 = vmatmul.mubr.f32.gmra.mxu0 %v939
    %v1007 = vpop.f32.mrf.mxu0
    %v1008 = vadd.f32 %v935, %v1007
    %v1009 = vpop.f32.mrf.mxu0
    %1010 = vdwg.mxu0
    %v1011 = vmax.f32 %v1008, 0.0
    %1012 = vrot.lane.b32.xlu0 %v1011, 16
    %v1013 = vpop.permute.xlu0 %1012
    %v1014 = vsel %vm351, %v1013, %v1011
    %1015 = vrot.lane.b32.xlu0 %v1014, 16
    %v1016 = vpop.permute.xlu0 %1015
    %v1017 = vsel %vm351, %v1016, %v1011
    %1019 = vrot.lane.b32.xlu0 %v1017, 113
    %v1020 = vpop.permute.xlu0 %1019
    %v1022 = vsel %vm914, %v1020, 0.0
    %1023 = vrot.lane.b32.xlu0 %v1017, 127
    %v1024 = vpop.permute.xlu0 %1023
    %v1026 = vsel %vm925, %v1024, 0.0
    %v1027 = vld [vmem:[%s9] sm:$0xff]
    %v1028 = vld [vmem:[%s10] sm:$0xff]
    %1030 = vset.pattern.permute.xlu0 0
    %1031 = vperm.xlu0 %1030, %v1028
    %v1032 = vpop.permute.xlu0 %1031
    %v1035 = vsel %vm937, %v1027, 0
    %1037 = vmatprep.subr.mxu0 0.0
    %1038 = vmatpush1.msra.mxu0 0.0
    %1039 = vmatprep.subr.mxu0 0.0
    %1040 = vmatpush1.msra.mxu0 0.0
    %1041 = vmatprep.subr.mxu0 0.0
    %1042 = vmatpush1.msra.mxu0 0.0
    %1043 = vmatprep.subr.mxu0 0.0
    %1044 = vmatpush1.msra.mxu0 0.0
    %1045 = vmatprep.subr.mxu0 0.0
    %1046 = vmatpush1.msra.mxu0 0.0
    %1047 = vmatprep.subr.mxu0 0.0
    %1048 = vmatpush1.msra.mxu0 0.0
    %1049 = vmatprep.subr.mxu0 0.0
    %1050 = vmatpush1.msra.mxu0 0.0
    %1051 = vmatprep.subr.mxu0 0.0
    %1052 = vmatpush1.msra.mxu0 0.0
    %1053 = vmatprep.subr.mxu0 0.0
    %1054 = vmatpush1.msra.mxu0 0.0
    %1055 = vmatprep.subr.mxu0 0.0
    %1056 = vmatpush1.msra.mxu0 0.0
    %1057 = vmatprep.subr.mxu0 0.0
    %1058 = vmatpush1.msra.mxu0 0.0
    %1059 = vmatprep.subr.mxu0 0.0
    %1060 = vmatpush1.msra.mxu0 0.0
    %1061 = vmatprep.subr.mxu0 0.0
    %1062 = vmatpush1.msra.mxu0 0.0
    %1063 = vmatprep.subr.mxu0 0.0
    %1064 = vmatpush1.msra.mxu0 %v1026
    %1065 = vmatprep.subr.mxu0 0.0
    %1066 = vmatpush1.msra.mxu0 %v1011
    %1067 = vmatprep.subr.mxu0 0.0
    %1068 = vmatpush1.msra.mxu0 %v1022
    %1069 = vmatprep.subr.mxu0 0.0
    %1070 = vmatpush2.msra.mxu0 0.0
    %1071 = vmatprep.subr.mxu0 0.0
    %1072 = vmatpush2.msra.mxu0 0.0
    %1073 = vmatprep.subr.mxu0 0.0
    %1074 = vmatpush2.msra.mxu0 0.0
    %1075 = vmatprep.subr.mxu0 0.0
    %1076 = vmatpush2.msra.mxu0 0.0
    %1077 = vmatprep.subr.mxu0 0.0
    %1078 = vmatpush2.msra.mxu0 0.0
    %1079 = vmatprep.subr.mxu0 0.0
    %1080 = vmatpush2.msra.mxu0 0.0
    %1081 = vmatprep.subr.mxu0 0.0
    %1082 = vmatpush2.msra.mxu0 0.0
    %1083 = vmatprep.subr.mxu0 0.0
    %1084 = vmatpush2.msra.mxu0 0.0
    %1085 = vmatprep.subr.mxu0 0.0
    %1086 = vmatpush2.msra.mxu0 0.0
    %1087 = vmatprep.subr.mxu0 0.0
    %1088 = vmatpush2.msra.mxu0 0.0
    %1089 = vmatprep.subr.mxu0 0.0
    %1090 = vmatpush2.msra.mxu0 0.0
    %1091 = vmatprep.subr.mxu0 0.0
    %1092 = vmatpush2.msra.mxu0 0.0
    %1093 = vmatprep.subr.mxu0 0.0
    %1094 = vmatpush2.msra.mxu0 0.0
    %1095 = vmatprep.subr.mxu0 0.0
    %1096 = vmatpush2.msra.mxu0 0.0
    %1097 = vmatprep.subr.mxu0 0.0
    %1098 = vmatpush2.msra.mxu0 0.0
    %1099 = vmatprep.subr.mxu0 0.0
    %1100 = vmatpush2.msra.mxu0 0.0
    %1101 = vmatprep.mubr.f32.mxu0 0.0
    %1102 = vmatmul.mubr.f32.gmra.mxu0 %v1035
    %v1103 = vpop.f32.mrf.mxu0
    %v1104 = vadd.f32 %v1032, %v1103
    %v1105 = vpop.f32.mrf.mxu0
    %1106 = vdwg.mxu0
    %1107 = vst.msk [vmem:[#allocation2] sm:$0xff] %vm45, %v1104
    // Predicated region
    $region46: #{tpu_custom_call.1} parent=1 // pred_check
      _
    $region47: #{tpu_custom_call.1} parent=1 // pred_check_branch
      %1109 = sbr.rel (0) target = $region49
    $region48: #{tpu_custom_call.1} parent=1 // pred_region
      %s1111 = ssub.s32 128, 128
      %1112 = vsyncadd [#allocation3], %s1111
      %s1114 = sshll.u32 [#allocation2], 4
      %s1115 = int_to_ptr.vmem [resolvable:$true] %s1114
      %1117 = dma.vmem_to_hbm [thread:$0]  %s1115, 128, %s11, [#allocation3]
    $region49: #{tpu_custom_call.1} parent=1 // pred_fallthru
      _
    // Predicated region
    $region50: #{tpu_custom_call.1} parent=1 // pred_check
      _
    $region51: #{tpu_custom_call.1} parent=1 // pred_check_branch
      %1119 = sbr.rel (0) target = $region53
    $region52: #{tpu_custom_call.1} parent=1 // pred_region
      %1120 = dma.done [#allocation3], 128
    $region53: #{tpu_custom_call.1} parent=1 // pred_fallthru
      _
    %1121 = vsyncpa [#allocation3], 1

</llo_original>
